<compile_context>
chip_gen: v7x
topology: tpu7x:2x2x1
jax: 0.10.0
libtpu: 0.0.40
codegen_flags: <defaults>
</compile_context>

<pallas_src>
import functools
import math

import jax
import jax.numpy as jnp
from jax import lax
from jax.experimental import pallas as pl
from jax.experimental.pallas import tpu as pltpu


# ----------------------------------------------------------------------------
# Fused kernel: GroupNorm + qkv + attention + proj + residual.
# ----------------------------------------------------------------------------
def _attention_block_kernel(x_ref, wqkv_ref, bqkv_ref, wproj_ref, bproj_ref,
                            o_ref, *, num_heads, num_groups, eps, approx_recip):
    mxu_dtype = wqkv_ref.dtype
    b_blk, C, T = x_ref.shape
    gs = C // num_groups                                   # channels per group
    d = C // num_heads                                     # head dim
    cnt = float(gs * T)

    for bb in range(b_blk):                                # static, usually 1
        x = x_ref[bb].astype(jnp.float32)                  # (C, T)

        # ---- GroupNorm(num_groups, C); gamma/beta are folded into qkv ----------
        # Two-pass (centered) variance: safer than E[x^2]-mean^2 for
        # non-unit-scale activations.
        s1 = jnp.sum(x, axis=1, keepdims=True)             # (C, 1)
        if gs == 1:
            mean = s1 / cnt
        else:
            g1 = jnp.sum(s1.reshape(num_groups, gs), axis=1, keepdims=True) / cnt
            mean = jnp.broadcast_to(g1, (num_groups, gs)).reshape(C, 1)
        xc = x - mean                                      # (C, T)
        s2 = jnp.sum(xc * xc, axis=1, keepdims=True)       # (C, 1)
        if gs == 1:
            var = s2 / cnt
        else:
            g2 = jnp.sum(s2.reshape(num_groups, gs), axis=1, keepdims=True) / cnt
            var = jnp.broadcast_to(g2, (num_groups, gs)).reshape(C, 1)
        xn = xc * lax.rsqrt(var + eps)                     # (C, T), no gamma/beta here

        # ---- qkv 1x1 conv: gamma folded into columns, beta folded into bias,
        #      q/k attention scale folded into rows (all done in the wrapper). ----
        qkv = jnp.dot(wqkv_ref[...], xn.astype(mxu_dtype),
                      preferred_element_type=jnp.float32) + bqkv_ref[...]  # (3C, T)

        # ---- attention over the T = H*W positions, per head ---------------------
        # Scores are computed transposed, (T_s, T_q): no q/k/v transposes, softmax
        # stats land lane-dense as (1, T) rows, PV is a plain NN matmul with a
        # lane-dense (d, T) result, and normalization is deferred to one small
        # multiply by an EUP reciprocal.
        out = x + bproj_ref[...]                           # residual + proj bias (f32)
        for hd in range(num_heads):
            base = 3 * d * hd
            q = qkv[base:base + d, :].astype(mxu_dtype)          # (d, T), scale folded
            k = qkv[base + d:base + 2 * d, :].astype(mxu_dtype)  # (d, T)
            v = qkv[base + 2 * d:base + 3 * d, :].astype(mxu_dtype)
            # s_t[s, t] = sum_c k[c, s] * q[c, t]
            s_t = lax.dot_general(k, q, (((0,), (0,)), ((), ())),
                                  preferred_element_type=jnp.float32)      # (T, T)
            m = jnp.max(s_t, axis=0, keepdims=True)              # (1, T) f32
            e = jnp.exp(s_t - m)                                 # (T, T) f32
            l = jnp.sum(e, axis=0, keepdims=True)                # (1, T) f32
            # pv[c, t] = sum_s v[c, s] * e[s, t]  (plain matmul, lane-dense output)
            pv = jnp.dot(v, e.astype(mxu_dtype),
                         preferred_element_type=jnp.float32)     # (d, T)
            h_head = pv * pl.reciprocal(l, approx=approx_recip)  # deferred softmax norm
            # Per-head projection accumulation (no concat of heads).
            w_p = wproj_ref[...] if num_heads == 1 else wproj_ref[:, hd * d:(hd + 1) * d]
            out = out + jnp.dot(w_p, h_head.astype(mxu_dtype),
                                preferred_element_type=jnp.float32)

        o_ref[bb] = out.astype(o_ref.dtype)


# ----------------------------------------------------------------------------
# Wrapper: constant folding + one fused pallas_call for the whole AttentionBlock.
# ----------------------------------------------------------------------------
@functools.partial(jax.jit, static_argnames=("num_heads", "num_groups", "eps",
                                             "mxu_dtype", "batch_block"))
def attention_block_pallas(x, params, num_heads=1, num_groups=32, eps=1e-5,
                           mxu_dtype=jnp.bfloat16, batch_block=1):
    B, C, H, W = x.shape
    assert C % num_groups == 0 and C % num_heads == 0 and B % batch_block == 0
    T = H * W
    d = C // num_heads
    x3 = x.reshape(B, C, T)                                # NCHW == (B, C, T)

    # ---- wrapper-side constant folding (once per weight, not per batch element) --
    f32 = jnp.float32
    gamma = params["gamma"].astype(f32)
    beta = params["beta"].astype(f32)
    w_qkv = params["w_qkv"].astype(f32)
    w_proj = params["w_proj"].astype(f32)
    b_proj = params["b_proj"].astype(f32)
    scale = 1.0 / math.sqrt(math.sqrt(d))
    head_scale = jnp.concatenate([jnp.full((2 * d,), scale, f32), jnp.ones((d,), f32)])
    row_scale = jnp.tile(head_scale, num_heads)            # (3C,) scale on q/k rows only
    w_qkv_eff = (w_qkv * gamma[None, :]) * row_scale[:, None]         # gamma -> columns
    b_qkv_eff = (jnp.dot(w_qkv, beta, precision=lax.Precision.HIGHEST)
                 * row_scale).reshape(3 * C, 1)                        # beta -> qkv bias

    kernel = functools.partial(
        _attention_block_kernel, num_heads=num_heads, num_groups=num_groups,
        eps=eps, approx_recip=(mxu_dtype != jnp.float32))

    # Rough scoped-VMEM need (pipelined x/out blocks + resident weights + (T,T)/(C,T)
    # temporaries).  Only raise the limit explicitly when it approaches the smallest
    # per-generation default (16 MiB on v5e); cap below v7x's 64 MiB physical VMEM.
    vmem_est = 4 * (2 * 2 * batch_block * C * T + 4 * C * C + 4 * C
                    + 4 * C * T + 3 * T * T)
    compiler_kwargs = dict(dimension_semantics=("parallel",))   # megacore shard on v7x
    if vmem_est > (12 << 20):
        compiler_kwargs["vmem_limit_bytes"] = int(min(2 * vmem_est, 64 << 20))

    cost = pl.CostEstimate(
        flops=int(2 * B * (3 * C * C * T + 2 * T * T * C + C * C * T)),
        transcendentals=int(B * num_heads * T * T),
        bytes_accessed=int(2 * B * C * T * x.dtype.itemsize
                           + 4 * C * C * jnp.dtype(mxu_dtype).itemsize
                           + 4 * C * 4))

    # TODO(synk): at large C, pass pipeline_mode=pl.Buffered(1) on the four
    # constant-index weight/bias specs below to halve their VMEM footprint (v7x).
    out = pl.pallas_call(
        kernel,
        out_shape=jax.ShapeDtypeStruct((B, C, T), x.dtype),
        grid=(B // batch_block,),
        in_specs=[
            pl.BlockSpec((batch_block, C, T), lambda b: (b, 0, 0)),  # x (pipelined)
            pl.BlockSpec((3 * C, C), lambda b: (0, 0)),              # W_qkv (resident)
            pl.BlockSpec((3 * C, 1), lambda b: (0, 0)),              # qkv bias (from beta)
            pl.BlockSpec((C, C), lambda b: (0, 0)),                  # W_proj
            pl.BlockSpec((C, 1), lambda b: (0, 0)),                  # b_proj
        ],
        out_specs=pl.BlockSpec((batch_block, C, T), lambda b: (b, 0, 0)),
        compiler_params=pltpu.CompilerParams(**compiler_kwargs),
        cost_estimate=cost,
    )(x3,
      w_qkv_eff.astype(mxu_dtype),
      b_qkv_eff,
      w_proj.astype(mxu_dtype),
      b_proj.reshape(C, 1))
    return out.reshape(B, C, H, W)


# ----------------------------------------------------------------------------
# Deterministic parameter construction (mirrors nn.GroupNorm / nn.Conv2d shapes)
# ----------------------------------------------------------------------------
def init_params(key, channels):
    k1, k2, k3, k4, k5 = jax.random.split(key, 5)
    bound = 1.0 / math.sqrt(channels)                      # 1x1 conv fan_in = channels
    return dict(
        gamma=1.0 + 0.1 * jax.random.normal(k1, (channels,), jnp.float32),
        beta=0.1 * jax.random.normal(k2, (channels,), jnp.float32),
        w_qkv=jax.random.uniform(k3, (3 * channels, channels), jnp.float32, -bound, bound),
        w_proj=jax.random.uniform(k4, (channels, channels), jnp.float32, -bound, bound),
        b_proj=jax.random.uniform(k5, (channels,), jnp.float32, -bound, bound),
    )


# ----------------------------------------------------------------------------
# Pure-JAX reference (mirrors the PyTorch forward exactly)
# ----------------------------------------------------------------------------
def attention_block_ref(x, params, num_heads=1, num_groups=32, eps=1e-5):
    B, C, H, W = x.shape
    T = H * W
    hp = lax.Precision.HIGHEST
    xr = x.reshape(B, num_groups, (C // num_groups) * H * W)
    mean = jnp.mean(xr, axis=2, keepdims=True)
    var = jnp.var(xr, axis=2, keepdims=True)
    xn = ((xr - mean) / jnp.sqrt(var + eps)).reshape(B, C, H, W)
    xn = xn * params["gamma"].reshape(1, C, 1, 1) + params["beta"].reshape(1, C, 1, 1)

    qkv = jnp.einsum("oc,bct->bot", params["w_qkv"], xn.reshape(B, C, T), precision=hp)
    d = C // num_heads
    qkv = qkv.reshape(B * num_heads, 3 * d, T)
    q, k, v = qkv[:, :d], qkv[:, d:2 * d], qkv[:, 2 * d:]
    scale = 1.0 / math.sqrt(math.sqrt(d))
    attn = jnp.einsum("bct,bcs->bts", q * scale, k * scale, precision=hp)
    attn = jax.nn.softmax(attn, axis=-1)
    h = jnp.einsum("bts,bcs->bct", attn, v, precision=hp).reshape(B, C, T)
    out = (jnp.einsum("oc,bct->bot", params["w_proj"], h, precision=hp)
           + params["b_proj"].reshape(1, C, 1))
    return out.reshape(B, C, H, W) + x


if __name__ == "__main__":
    key = jax.random.PRNGKey(0)
    kx, kp = jax.random.split(key)

    # GroupNorm(32, C) requires C % 32 == 0 -> smallest consistent channels = 32.
    B, C, H, W = 2, 32, 16, 16
    num_heads = 1
    x = jax.random.normal(kx, (B, C, H, W), jnp.float32)   # NCHW, like PyTorch
    params = init_params(kp, C)

    ref = jax.block_until_ready(attention_block_ref(x, params, num_heads=num_heads))

    # f32 MXU path: near bit-faithful check against the f32 reference.
    out_f32 = jax.block_until_ready(
        attention_block_pallas(x, params, num_heads=num_heads, mxu_dtype=jnp.float32))
    assert out_f32.shape == x.shape and out_f32.dtype == x.dtype
    if not jnp.allclose(out_f32, ref, atol=1e-3, rtol=1e-3):
        raise AssertionError(
            f"f32 path mismatch (max abs err {jnp.max(jnp.abs(out_f32 - ref))})")

    # bf16 MXU path (default; recommended on v6e/v7x — stats stay in f32).
    out_bf16 = jax.block_until_ready(
        attention_block_pallas(x, params, num_heads=num_heads))
    assert out_bf16.shape == x.shape and out_bf16.dtype == x.dtype
    if not jnp.allclose(out_bf16, ref, atol=3e-2, rtol=3e-2):
        raise AssertionError(
            f"bf16 path mismatch (max abs err {jnp.max(jnp.abs(out_bf16 - ref))})")

    print("KERNEL_OK")
</pallas_src>

<mosaic_0001>
module attributes {stable_mosaic.version = 11 : i64} {
  func.func @_attention_block_kernel(%arg0: i32, %arg1: memref<1x32x256xf32, #tpu.memory_space<vmem>>, %arg2: memref<96x32xf32, #tpu.memory_space<vmem>>, %arg3: memref<96x1xf32, #tpu.memory_space<vmem>>, %arg4: memref<32x32xf32, #tpu.memory_space<vmem>>, %arg5: memref<32x1xf32, #tpu.memory_space<vmem>>, %arg6: memref<1x32x256xf32, #tpu.memory_space<vmem>>) attributes {dimension_semantics = [#tpu.dimension_semantics<parallel>], iteration_bounds = array<i64: 2>, scalar_prefetch = 0 : i64, scratch_operands = 0 : i64, tpu.core_type = #tpu.core_type<tc>, window_params = [{transform_indices = @transform_0, window_bounds = array<i64: 1, 32, 256>}, {pipeline_mode = #tpu.pipeline_mode<synchronous>, transform_indices = @transform_1, window_bounds = array<i64: 96, 32>}, {pipeline_mode = #tpu.pipeline_mode<synchronous>, transform_indices = @transform_2, window_bounds = array<i64: 96, 1>}, {pipeline_mode = #tpu.pipeline_mode<synchronous>, transform_indices = @transform_3, window_bounds = array<i64: 32, 32>}, {pipeline_mode = #tpu.pipeline_mode<synchronous>, transform_indices = @transform_4, window_bounds = array<i64: 32, 1>}, {transform_indices = @transform_5, window_bounds = array<i64: 1, 32, 256>}]} {
    %c0 = arith.constant 0 : index
    %c0_0 = arith.constant 0 : index
    %c0_1 = arith.constant 0 : index
    %0 = vector.load %arg1[%c0, %c0_0, %c0_1] : memref<1x32x256xf32, #tpu.memory_space<vmem>>, vector<1x32x256xf32>
    %1 = vector.shape_cast %0 : vector<1x32x256xf32> to vector<32x256xf32>
    %cst = arith.constant dense<0.000000e+00> : vector<32xf32>
    %2 = vector.multi_reduction <add>, %1, %cst [1] : vector<32x256xf32> to vector<32xf32>
    %3 = vector.shape_cast %2 : vector<32xf32> to vector<32x1xf32>
    %cst_2 = arith.constant 2.560000e+02 : f32
    %4 = vector.broadcast %cst_2 : f32 to vector<32x1xf32>
    %5 = arith.divf %3, %4 : vector<32x1xf32>
    %6 = vector.broadcast %5 : vector<32x1xf32> to vector<32x256xf32>
    %7 = arith.subf %1, %6 : vector<32x256xf32>
    %8 = arith.mulf %7, %7 : vector<32x256xf32>
    %cst_3 = arith.constant dense<0.000000e+00> : vector<32xf32>
    %9 = vector.multi_reduction <add>, %8, %cst_3 [1] : vector<32x256xf32> to vector<32xf32>
    %10 = vector.shape_cast %9 : vector<32xf32> to vector<32x1xf32>
    %cst_4 = arith.constant 2.560000e+02 : f32
    %11 = vector.broadcast %cst_4 : f32 to vector<32x1xf32>
    %12 = arith.divf %10, %11 : vector<32x1xf32>
    %cst_5 = arith.constant 9.99999974E-6 : f32
    %13 = vector.broadcast %cst_5 : f32 to vector<32x1xf32>
    %14 = arith.addf %12, %13 : vector<32x1xf32>
    %15 = math.rsqrt %14 : vector<32x1xf32>
    %16 = vector.broadcast %15 : vector<32x1xf32> to vector<32x256xf32>
    %17 = arith.mulf %7, %16 : vector<32x256xf32>
    %c0_6 = arith.constant 0 : index
    %c0_7 = arith.constant 0 : index
    %18 = vector.load %arg2[%c0_6, %c0_7] : memref<96x32xf32, #tpu.memory_space<vmem>>, vector<96x32xf32>
    %cst_8 = arith.constant dense<0.000000e+00> : vector<96x256xf32>
    %19 = tpu.matmul %18, %17, %cst_8 {dimension_numbers = #tpu.dot_dimension_numbers<[1], [0], [0], [1], [0, 0, 1, 1], [], []>} : vector<96x32xf32>, vector<32x256xf32>, vector<96x256xf32> -> vector<96x256xf32>
    %c0_9 = arith.constant 0 : index
    %c0_10 = arith.constant 0 : index
    %20 = vector.load %arg3[%c0_9, %c0_10] : memref<96x1xf32, #tpu.memory_space<vmem>>, vector<96x1xf32>
    %21 = vector.broadcast %20 : vector<96x1xf32> to vector<96x256xf32>
    %22 = arith.addf %19, %21 : vector<96x256xf32>
    %c0_11 = arith.constant 0 : index
    %c0_12 = arith.constant 0 : index
    %23 = vector.load %arg5[%c0_11, %c0_12] : memref<32x1xf32, #tpu.memory_space<vmem>>, vector<32x1xf32>
    %24 = vector.broadcast %23 : vector<32x1xf32> to vector<32x256xf32>
    %25 = arith.addf %1, %24 : vector<32x256xf32>
    %26 = vector.extract_strided_slice %22 {offsets = [0, 0], sizes = [32, 256], strides = [1, 1]} : vector<96x256xf32> to vector<32x256xf32>
    %27 = vector.extract_strided_slice %22 {offsets = [32, 0], sizes = [32, 256], strides = [1, 1]} : vector<96x256xf32> to vector<32x256xf32>
    %28 = vector.extract_strided_slice %22 {offsets = [64, 0], sizes = [32, 256], strides = [1, 1]} : vector<96x256xf32> to vector<32x256xf32>
    %cst_13 = arith.constant dense<0.000000e+00> : vector<256x256xf32>
    %29 = tpu.matmul %27, %26, %cst_13 {dimension_numbers = #tpu.dot_dimension_numbers<[0], [0], [1], [1], [0, 1, 1, 1], [], []>} : vector<32x256xf32>, vector<32x256xf32>, vector<256x256xf32> -> vector<256x256xf32>
    %cst_14 = arith.constant dense<0xFF800000> : vector<256xf32>
    %30 = vector.multi_reduction <maximumf>, %29, %cst_14 [0] : vector<256x256xf32> to vector<256xf32>
    %31 = vector.shape_cast %30 : vector<256xf32> to vector<1x256xf32>
    %32 = vector.broadcast %31 : vector<1x256xf32> to vector<256x256xf32>
    %33 = arith.subf %29, %32 : vector<256x256xf32>
    %34 = math.exp %33 : vector<256x256xf32>
    %cst_15 = arith.constant dense<0.000000e+00> : vector<256xf32>
    %35 = vector.multi_reduction <add>, %34, %cst_15 [0] : vector<256x256xf32> to vector<256xf32>
    %36 = vector.shape_cast %35 : vector<256xf32> to vector<1x256xf32>
    %cst_16 = arith.constant dense<0.000000e+00> : vector<32x256xf32>
    %37 = tpu.matmul %28, %34, %cst_16 {dimension_numbers = #tpu.dot_dimension_numbers<[1], [0], [0], [1], [0, 0, 1, 1], [], []>} : vector<32x256xf32>, vector<256x256xf32>, vector<32x256xf32> -> vector<32x256xf32>
    %38 = tpu.reciprocal %36 : vector<1x256xf32> -> vector<1x256xf32>
    %39 = vector.broadcast %38 : vector<1x256xf32> to vector<32x256xf32>
    %40 = arith.mulf %37, %39 : vector<32x256xf32>
    %c0_17 = arith.constant 0 : index
    %c0_18 = arith.constant 0 : index
    %41 = vector.load %arg4[%c0_17, %c0_18] : memref<32x32xf32, #tpu.memory_space<vmem>>, vector<32x32xf32>
    %cst_19 = arith.constant dense<0.000000e+00> : vector<32x256xf32>
    %42 = tpu.matmul %41, %40, %cst_19 {dimension_numbers = #tpu.dot_dimension_numbers<[1], [0], [0], [1], [0, 0, 1, 1], [], []>} : vector<32x32xf32>, vector<32x256xf32>, vector<32x256xf32> -> vector<32x256xf32>
    %43 = arith.addf %25, %42 : vector<32x256xf32>
    %c0_20 = arith.constant 0 : index
    %c0_21 = arith.constant 0 : index
    %c0_22 = arith.constant 0 : index
    %44 = vector.load %arg6[%c0_20, %c0_21, %c0_22] : memref<1x32x256xf32, #tpu.memory_space<vmem>>, vector<1x32x256xf32>
    %45 = vector.shape_cast %44 : vector<1x32x256xf32> to vector<32x256xf32>
    %46 = vector.shape_cast %43 : vector<32x256xf32> to vector<1x32x256xf32>
    tpu.vector_store %arg6[%c0_20, %c0_21, %c0_22], %46 {strides = array<i32>} : memref<1x32x256xf32, #tpu.memory_space<vmem>>, vector<1x32x256xf32>,
    return
  }
  func.func @transform_0(%arg0: i32) -> (i32, i32, i32) {
    %c0_i32 = arith.constant 0 : i32
    %c0_i32_0 = arith.constant 0 : i32
    %c0_i32_1 = arith.constant 0 : i32
    return %arg0, %c0_i32, %c0_i32_0 : i32, i32, i32
  }
  func.func @transform_1(%arg0: i32) -> (i32, i32) {
    %c0_i32 = arith.constant 0 : i32
    %c0_i32_0 = arith.constant 0 : i32
    %c0_i32_1 = arith.constant 0 : i32
    return %c0_i32, %c0_i32_0 : i32, i32
  }
  func.func @transform_2(%arg0: i32) -> (i32, i32) {
    %c0_i32 = arith.constant 0 : i32
    %c0_i32_0 = arith.constant 0 : i32
    %c0_i32_1 = arith.constant 0 : i32
    return %c0_i32, %c0_i32_0 : i32, i32
  }
  func.func @transform_3(%arg0: i32) -> (i32, i32) {
    %c0_i32 = arith.constant 0 : i32
    %c0_i32_0 = arith.constant 0 : i32
    %c0_i32_1 = arith.constant 0 : i32
    return %c0_i32, %c0_i32_0 : i32, i32
  }
  func.func @transform_4(%arg0: i32) -> (i32, i32) {
    %c0_i32 = arith.constant 0 : i32
    %c0_i32_0 = arith.constant 0 : i32
    %c0_i32_1 = arith.constant 0 : i32
    return %c0_i32, %c0_i32_0 : i32, i32
  }
  func.func @transform_5(%arg0: i32) -> (i32, i32, i32) {
    %c0_i32 = arith.constant 0 : i32
    %c0_i32_0 = arith.constant 0 : i32
    %c0_i32_1 = arith.constant 0 : i32
    return %arg0, %c0_i32, %c0_i32_0 : i32, i32, i32
  }
}

</mosaic_0001>

<llo_original>
// kernel: attention_block_pallas.1
$region0: #{attention_block_pallas.1}
  #allocation0 [shape = 'u32[]', space=smem, size = 0x4, offset = 0x4, fixed_abs, tag = 'smem constant byte address 0x4 - core index']
  #allocation1 [shape = 'u32[144,128]{1,0:T(1,128)}', space=vmem, size = 0x12000, scoped, tag = 'internal scratch']
  %s0 = inlined_call_operand.vmem [shape: f32[2,32,256], index: 0, kind: input, shape index: {}]
  %s1 = inlined_call_operand.vmem [shape: f32[96,32], index: 1, kind: input, shape index: {}]
  %s2 = inlined_call_operand.vmem [shape: f32[96,1], index: 2, kind: input, shape index: {}]
  %s3 = inlined_call_operand.vmem [shape: f32[32,32], index: 3, kind: input, shape index: {}]
  %s4 = inlined_call_operand.vmem [shape: f32[32,1], index: 4, kind: input, shape index: {}]
  %s5 = inlined_call_operand.vmem [shape: f32[2,32,256], index: 5, kind: output, shape index: {}]
  %s6 = sld [smem:[#allocation0]]
  $region53: #{attention_block_pallas.1} parent=0
    _
  %s8 = ssub.s32 1, %s6
  %s9 = scalar_select 0, %s8, %s6
  loop: start=0, step=1, limit=4
  $region2: #{attention_block_pallas.1} parent=0 // loop_pre_header
    _
  $region3: #{attention_block_pallas.1} parent=0 // loop_header
    %s11 = sphi 0, %s15
    %p12 = scmp.ge.s32.totalorder %s11, 4
    %s21 = sphi 0, %s23
    %s24 = sphi 0, %s21
    %s25 = sphi 0, %s24
    %s41 = sphi 0, %s25
    %s45 = sphi 0, %s45
    %s47 = sphi 0, %s45
    %s48 = sphi 0, %s47
    %s62 = sphi 0, %s48
    %s66 = sphi 0, %s66
    %s68 = sphi 0, %s66
    %s69 = sphi 0, %s68
    %s83 = sphi 0, %s69
    %s87 = sphi 0, %s87
    %s89 = sphi 0, %s87
    %s90 = sphi 0, %s89
    %s104 = sphi 0, %s90
    %s108 = sphi 0, %s108
    %s110 = sphi 0, %s108
    %s111 = sphi 0, %s110
    %s125 = sphi 0, %s111
    %s131 = sphi 0, %s133
    %s134 = sphi 0, %s131
    %s135 = sphi 0, %s134
    %s151 = sphi 0, %s135
  $region4: #{attention_block_pallas.1} parent=0 // loop_header_branch
    %14 = sbr.rel (%p12) target = $region8
  $region5: #{attention_block_pallas.1} parent=0 // loop_body
    %s16 = ssub.s32 %s11, 1
    %s17 = ssub.s32 %s11, 2
    %s18 = sadd.s32 %s11, 1
    %s19 = ssub.s32 %s11, %s18
    %p20 = scmp.eq.s32.totalorder %s19, 0
    %s22 = sadd.s32 %s21, 1
    %s23 = scalar_select %p20, %s21, %s22
    %p26 = pneg %p20
    %p27 = scmp.eq.s32.totalorder %s11, 1
    %p28 = por %p26, %p27
    %p29 = scmp.ne.s32.totalorder %s21, %s24
    %p30 = scmp.eq.s32.totalorder %s11, 0
    %p31 = por %p29, %p30
    %p32 = scmp.ne.s32.totalorder %s21, %s24
    %p33 = scmp.eq.s32.totalorder %s16, 1
    %p34 = por %p32, %p33
    %p35 = scmp.ne.s32.totalorder %s24, %s25
    %p36 = scmp.eq.s32.totalorder %s16, 0
    %p37 = por %p35, %p36
    %p38 = scmp.ne.s32.totalorder %s24, %s25
    %p39 = scmp.eq.s32.totalorder %s17, 1
    %p40 = por %p38, %p39
    %p42 = scmp.ne.s32.totalorder %s25, %s41
    %p43 = scmp.eq.s32.totalorder %s17, 0
    %p44 = por %p42, %p43
    %s46 = sadd.s32 %s45, 1
    %p49 = scmp.eq.s32.totalorder %s11, 1
    %p50 = scmp.ne.s32.totalorder %s45, %s47
    %p51 = scmp.eq.s32.totalorder %s11, 0
    %p52 = por %p50, %p51
    %p53 = scmp.ne.s32.totalorder %s45, %s47
    %p54 = scmp.eq.s32.totalorder %s16, 1
    %p55 = por %p53, %p54
    %p56 = scmp.ne.s32.totalorder %s47, %s48
    %p57 = scmp.eq.s32.totalorder %s16, 0
    %p58 = por %p56, %p57
    %p59 = scmp.ne.s32.totalorder %s47, %s48
    %p60 = scmp.eq.s32.totalorder %s17, 1
    %p61 = por %p59, %p60
    %p63 = scmp.ne.s32.totalorder %s48, %s62
    %p64 = scmp.eq.s32.totalorder %s17, 0
    %p65 = por %p63, %p64
    %s67 = sadd.s32 %s66, 1
    %p70 = scmp.eq.s32.totalorder %s11, 1
    %p71 = scmp.ne.s32.totalorder %s66, %s68
    %p72 = scmp.eq.s32.totalorder %s11, 0
    %p73 = por %p71, %p72
    %p74 = scmp.ne.s32.totalorder %s66, %s68
    %p75 = scmp.eq.s32.totalorder %s16, 1
    %p76 = por %p74, %p75
    %p77 = scmp.ne.s32.totalorder %s68, %s69
    %p78 = scmp.eq.s32.totalorder %s16, 0
    %p79 = por %p77, %p78
    %p80 = scmp.ne.s32.totalorder %s68, %s69
    %p81 = scmp.eq.s32.totalorder %s17, 1
    %p82 = por %p80, %p81
    %p84 = scmp.ne.s32.totalorder %s69, %s83
    %p85 = scmp.eq.s32.totalorder %s17, 0
    %p86 = por %p84, %p85
    %s88 = sadd.s32 %s87, 1
    %p91 = scmp.eq.s32.totalorder %s11, 1
    %p92 = scmp.ne.s32.totalorder %s87, %s89
    %p93 = scmp.eq.s32.totalorder %s11, 0
    %p94 = por %p92, %p93
    %p95 = scmp.ne.s32.totalorder %s87, %s89
    %p96 = scmp.eq.s32.totalorder %s16, 1
    %p97 = por %p95, %p96
    %p98 = scmp.ne.s32.totalorder %s89, %s90
    %p99 = scmp.eq.s32.totalorder %s16, 0
    %p100 = por %p98, %p99
    %p101 = scmp.ne.s32.totalorder %s89, %s90
    %p102 = scmp.eq.s32.totalorder %s17, 1
    %p103 = por %p101, %p102
    %p105 = scmp.ne.s32.totalorder %s90, %s104
    %p106 = scmp.eq.s32.totalorder %s17, 0
    %p107 = por %p105, %p106
    %s109 = sadd.s32 %s108, 1
    %p112 = scmp.eq.s32.totalorder %s11, 1
    %p113 = scmp.ne.s32.totalorder %s108, %s110
    %p114 = scmp.eq.s32.totalorder %s11, 0
    %p115 = por %p113, %p114
    %p116 = scmp.ne.s32.totalorder %s108, %s110
    %p117 = scmp.eq.s32.totalorder %s16, 1
    %p118 = por %p116, %p117
    %p119 = scmp.ne.s32.totalorder %s110, %s111
    %p120 = scmp.eq.s32.totalorder %s16, 0
    %p121 = por %p119, %p120
    %p122 = scmp.ne.s32.totalorder %s110, %s111
    %p123 = scmp.eq.s32.totalorder %s17, 1
    %p124 = por %p122, %p123
    %p126 = scmp.ne.s32.totalorder %s111, %s125
    %p127 = scmp.eq.s32.totalorder %s17, 0
    %p128 = por %p126, %p127
    %s129 = ssub.s32 %s11, %s18
    %p130 = scmp.eq.s32.totalorder %s129, 0
    %s132 = sadd.s32 %s131, 1
    %s133 = scalar_select %p130, %s131, %s132
    %p136 = pneg %p130
    %p137 = scmp.eq.s32.totalorder %s11, 1
    %p138 = por %p136, %p137
    %p139 = scmp.ne.s32.totalorder %s131, %s134
    %p140 = scmp.eq.s32.totalorder %s11, 0
    %p141 = por %p139, %p140
    %p142 = scmp.ne.s32.totalorder %s131, %s134
    %p143 = scmp.eq.s32.totalorder %s16, 1
    %p144 = por %p142, %p143
    %p145 = scmp.ne.s32.totalorder %s134, %s135
    %p146 = scmp.eq.s32.totalorder %s16, 0
    %p147 = por %p145, %p146
    %p148 = scmp.ne.s32.totalorder %s134, %s135
    %p149 = scmp.eq.s32.totalorder %s17, 1
    %p150 = por %p148, %p149
    %p152 = scmp.ne.s32.totalorder %s135, %s151
    %p153 = scmp.eq.s32.totalorder %s17, 0
    %p154 = por %p152, %p153
    %p155 = scmp.le.s32.totalorder 1, %s11
    %p156 = scmp.lt.s32.totalorder %s11, 3
    %p157 = pnand %p155, %p156
    %p158 = pneg %p157
    // Predicated region
    $region9: #{attention_block_pallas.1} parent=5 // pred_check
      _
    $region10: #{attention_block_pallas.1} parent=5 // pred_check_branch
      %160 = sbr.rel (%p157) target = $region12
    $region11: #{attention_block_pallas.1} parent=5 // pred_region
      %s161 = ssub.s32 %s11, 1
      // Predicated region
      $region13: #{attention_block_pallas.1} parent=11 // pred_check
        %p162 = pneg %p58
      $region14: #{attention_block_pallas.1} parent=11 // pred_check_branch
        %164 = sbr.rel (%p162) target = $region16
      $region15: #{attention_block_pallas.1} parent=11 // pred_region
        _
      $region16: #{attention_block_pallas.1} parent=11 // pred_fallthru
        _
      // Predicated region
      $region17: #{attention_block_pallas.1} parent=11 // pred_check
        %p165 = pneg %p79
      $region18: #{attention_block_pallas.1} parent=11 // pred_check_branch
        %167 = sbr.rel (%p165) target = $region20
      $region19: #{attention_block_pallas.1} parent=11 // pred_region
        _
      $region20: #{attention_block_pallas.1} parent=11 // pred_fallthru
        _
      // Predicated region
      $region21: #{attention_block_pallas.1} parent=11 // pred_check
        %p168 = pneg %p100
      $region22: #{attention_block_pallas.1} parent=11 // pred_check_branch
        %170 = sbr.rel (%p168) target = $region24
      $region23: #{attention_block_pallas.1} parent=11 // pred_region
        _
      $region24: #{attention_block_pallas.1} parent=11 // pred_fallthru
        _
      // Predicated region
      $region25: #{attention_block_pallas.1} parent=11 // pred_check
        %p171 = pneg %p121
      $region26: #{attention_block_pallas.1} parent=11 // pred_check_branch
        %173 = sbr.rel (%p171) target = $region28
      $region27: #{attention_block_pallas.1} parent=11 // pred_region
        _
      $region28: #{attention_block_pallas.1} parent=11 // pred_fallthru
        _
    $region12: #{attention_block_pallas.1} parent=5 // pred_fallthru
      _
    %p174 = scmp.lt.s32.totalorder %s11, 2
    // Predicated region
    $region29: #{attention_block_pallas.1} parent=5 // pred_check
      %p175 = pneg %p174
    $region30: #{attention_block_pallas.1} parent=5 // pred_check_branch
      %177 = sbr.rel (%p175) target = $region32
    $region31: #{attention_block_pallas.1} parent=5 // pred_region
      // Predicated region
      $region33: #{attention_block_pallas.1} parent=31 // pred_check
        %p178 = pneg %p31
      $region34: #{attention_block_pallas.1} parent=31 // pred_check_branch
        %180 = sbr.rel (%p178) target = $region36
      $region35: #{attention_block_pallas.1} parent=31 // pred_region
        %p181 = scmp.lt.s32.totalorder %s11, 1
        %s182 = scalar_select %p181, %s11, 1
        %s183 = smul.addr %s182, 8
        %s184 = smul.addr %s183, 8
        %s185 = scalar_lea.vmem %s0, %s184
      $region36: #{attention_block_pallas.1} parent=31 // pred_fallthru
        _
    $region32: #{attention_block_pallas.1} parent=5 // pred_fallthru
      _
    %p186 = scmp.le.s32.totalorder 1, %s11
    %p187 = scmp.lt.s32.totalorder %s11, 3
    %p188 = pnand %p186, %p187
    %p189 = pneg %p188
    // Predicated region
    $region37: #{attention_block_pallas.1} parent=5 // pred_check
      _
    $region38: #{attention_block_pallas.1} parent=5 // pred_check_branch
      %191 = sbr.rel (%p188) target = $region40
    $region39: #{attention_block_pallas.1} parent=5 // pred_region
      %s192 = ssub.s32 %s11, 1
      %p193 = scmp.lt.s32.totalorder %s16, 1
      %s194 = scalar_select %p193, %s16, 1
      %s195 = smul.addr %s194, 8
      %s196 = smul.addr %s195, 8
      %s197 = scalar_lea.vmem %s0, %s196
      %p198 = pneg %p37
      %p199 = pneg %p34
      %p200 = pneg %p58
      %p201 = pneg %p55
      %p202 = pneg %p79
      %p203 = pneg %p76
      %p204 = pneg %p100
      %p205 = pneg %p97
      %p206 = pneg %p121
      %p207 = pneg %p118
      %p208 = pneg %p147
      %p209 = pneg %p144
      %p210 = scmp.lt.s32.totalorder %s16, 1
      %s211 = scalar_select %p210, %s16, 1
      %s212 = smul.addr %s211, 8
      %s213 = smul.addr %s212, 8
      %s214 = scalar_lea.vmem %s5, %s213
      %p215 = scmp.lt.s32.totalorder %s16, 1
      %s216 = scalar_select %p215, %s16, 1
      %s217 = smul.addr %s216, 8
      %s218 = smul.addr %s217, 8
      %s219 = scalar_lea.vmem %s0, %s218
      %p220 = scmp.lt.s32.totalorder %s16, 1
      %s221 = scalar_select %p220, %s16, 1
      %s222 = smul.addr %s221, 8
      %s223 = smul.addr %s222, 8
      %s224 = scalar_lea.vmem %s5, %s223
      %v225 = vld [vmem:[%s219] sm:$0xff]
      %v226 = vld [vmem:[%s219 + $0x8] sm:$0xff]
      %v227 = vld [vmem:[%s219 + $0x10] sm:$0xff]
      %v228 = vld [vmem:[%s219 + $0x18] sm:$0xff]
      %v229 = vld [vmem:[%s219 + $0x20] sm:$0xff]
      %v230 = vld [vmem:[%s219 + $0x28] sm:$0xff]
      %v231 = vld [vmem:[%s219 + $0x30] sm:$0xff]
      %v232 = vld [vmem:[%s219 + $0x38] sm:$0xff]
      %v233 = vadd.f32 %v225, %v226
      %234 = vadd.xlane.f32.xlu0 %v233
      %v235 = vpop.xlane.xlu0 %234
      %v236 = vadd.f32 %v227, %v228
      %237 = vadd.xlane.f32.xlu0 %v236
      %v238 = vpop.xlane.xlu0 %237
      %v239 = vadd.f32 %v229, %v230
      %240 = vadd.xlane.f32.xlu0 %v239
      %v241 = vpop.xlane.xlu0 %240
      %v242 = vadd.f32 %v231, %v232
      %243 = vadd.xlane.f32.xlu0 %v242
      %v244 = vpop.xlane.xlu0 %243
      %v245 = vrcp.pop 256.0
      %v246 = vmul.f32 %v235, %v245
      %v247 = vmul.f32 %v238, %v245
      %v248 = vmul.f32 %v241, %v245
      %v249 = vmul.f32 %v244, %v245
      %v250 = vsub.f32 %v225, %v246
      %v251 = vsub.f32 %v226, %v246
      %v252 = vsub.f32 %v227, %v247
      %v253 = vsub.f32 %v228, %v247
      %v254 = vsub.f32 %v229, %v248
      %v255 = vsub.f32 %v230, %v248
      %v256 = vsub.f32 %v231, %v249
      %v257 = vsub.f32 %v232, %v249
      %v258 = vmul.f32 %v250, %v250
      %v259 = vmul.f32 %v251, %v251
      %v260 = vmul.f32 %v252, %v252
      %v261 = vmul.f32 %v253, %v253
      %v262 = vmul.f32 %v254, %v254
      %v263 = vmul.f32 %v255, %v255
      %v264 = vmul.f32 %v256, %v256
      %v265 = vmul.f32 %v257, %v257
      %v266 = vadd.f32 %v258, %v259
      %267 = vadd.xlane.f32.xlu0 %v266
      %v268 = vpop.xlane.xlu0 %267
      %v269 = vadd.f32 %v260, %v261
      %270 = vadd.xlane.f32.xlu0 %v269
      %v271 = vpop.xlane.xlu0 %270
      %v272 = vadd.f32 %v262, %v263
      %273 = vadd.xlane.f32.xlu0 %v272
      %v274 = vpop.xlane.xlu0 %273
      %v275 = vadd.f32 %v264, %v265
      %276 = vadd.xlane.f32.xlu0 %v275
      %v277 = vpop.xlane.xlu0 %276
      %v278 = vmul.f32 %v268, %v245
      %v279 = vmul.f32 %v271, %v245
      %v280 = vmul.f32 %v274, %v245
      %v281 = vmul.f32 %v277, %v245
      %v282 = vadd.f32 %v278, 1e-05
      %v283 = vadd.f32 %v279, 1e-05
      %v284 = vadd.f32 %v280, 1e-05
      %v285 = vadd.f32 %v281, 1e-05
      %v286 = vrsqrt.pop %v282
      %v287 = vrsqrt.pop %v283
      %v288 = vrsqrt.pop %v284
      %v289 = vrsqrt.pop %v285
      %v290 = vmul.f32 %v250, %v286
      %v291 = vmul.f32 %v251, %v286
      %v292 = vmul.f32 %v252, %v287
      %v293 = vmul.f32 %v253, %v287
      %v294 = vmul.f32 %v254, %v288
      %v295 = vmul.f32 %v255, %v288
      %v296 = vmul.f32 %v256, %v289
      %v297 = vmul.f32 %v257, %v289
      %v298 = vld [vmem:[%s1] sm:$0xff]
      %v299 = vld [vmem:[%s1 + $0x8] sm:$0xff]
      %v300 = vld [vmem:[%s1 + $0x10] sm:$0xff]
      %v301 = vld [vmem:[%s1 + $0x18] sm:$0xff]
      %v302 = vld [vmem:[%s1 + $0x20] sm:$0xff]
      %v303 = vld [vmem:[%s1 + $0x28] sm:$0xff]
      %v304 = vld [vmem:[%s1 + $0x30] sm:$0xff]
      %v305 = vld [vmem:[%s1 + $0x38] sm:$0xff]
      %v306 = vld [vmem:[%s1 + $0x40] sm:$0xff]
      %v307 = vld [vmem:[%s1 + $0x48] sm:$0xff]
      %v308 = vld [vmem:[%s1 + $0x50] sm:$0xff]
      %v309 = vld [vmem:[%s1 + $0x58] sm:$0xff]
      %v310 = vld [vmem:[%s2] sm:$0xff]
      %v311 = vld [vmem:[%s2 + $0x8] sm:$0xff]
      %v312 = vld [vmem:[%s2 + $0x10] sm:$0xff]
      %v313 = vld [vmem:[%s2 + $0x18] sm:$0xff]
      %v314 = vld [vmem:[%s2 + $0x20] sm:$0xff]
      %v315 = vld [vmem:[%s2 + $0x28] sm:$0xff]
      %v316 = vld [vmem:[%s2 + $0x30] sm:$0xff]
      %v317 = vld [vmem:[%s2 + $0x38] sm:$0xff]
      %v318 = vld [vmem:[%s2 + $0x40] sm:$0xff]
      %v319 = vld [vmem:[%s2 + $0x48] sm:$0xff]
      %v320 = vld [vmem:[%s2 + $0x50] sm:$0xff]
      %v321 = vld [vmem:[%s2 + $0x58] sm:$0xff]
      %323 = vset.pattern.permute.xlu0 0
      %324 = vperm.xlu0 %323, %v310
      %v325 = vpop.permute.xlu0 %324
      %328 = vset.pattern.permute.xlu0 0
      %329 = vperm.xlu0 %328, %v311
      %v330 = vpop.permute.xlu0 %329
      %333 = vset.pattern.permute.xlu0 0
      %334 = vperm.xlu0 %333, %v312
      %v335 = vpop.permute.xlu0 %334
      %338 = vset.pattern.permute.xlu0 0
      %339 = vperm.xlu0 %338, %v313
      %v340 = vpop.permute.xlu0 %339
      %343 = vset.pattern.permute.xlu0 0
      %344 = vperm.xlu0 %343, %v314
      %v345 = vpop.permute.xlu0 %344
      %348 = vset.pattern.permute.xlu0 0
      %349 = vperm.xlu0 %348, %v315
      %v350 = vpop.permute.xlu0 %349
      %353 = vset.pattern.permute.xlu0 0
      %354 = vperm.xlu0 %353, %v316
      %v355 = vpop.permute.xlu0 %354
      %358 = vset.pattern.permute.xlu0 0
      %359 = vperm.xlu0 %358, %v317
      %v360 = vpop.permute.xlu0 %359
      %363 = vset.pattern.permute.xlu0 0
      %364 = vperm.xlu0 %363, %v318
      %v365 = vpop.permute.xlu0 %364
      %368 = vset.pattern.permute.xlu0 0
      %369 = vperm.xlu0 %368, %v319
      %v370 = vpop.permute.xlu0 %369
      %373 = vset.pattern.permute.xlu0 0
      %374 = vperm.xlu0 %373, %v320
      %v375 = vpop.permute.xlu0 %374
      %378 = vset.pattern.permute.xlu0 0
      %379 = vperm.xlu0 %378, %v321
      %v380 = vpop.permute.xlu0 %379
      %vm382 = vcmask 261120
      %v384 = vsel %vm382, %v298, 0
      %v387 = vsel %vm382, %v299, 0
      %v390 = vsel %vm382, %v300, 0
      %v393 = vsel %vm382, %v301, 0
      %v396 = vsel %vm382, %v302, 0
      %v399 = vsel %vm382, %v303, 0
      %v402 = vsel %vm382, %v304, 0
      %v405 = vsel %vm382, %v305, 0
      %v408 = vsel %vm382, %v306, 0
      %v411 = vsel %vm382, %v307, 0
      %v414 = vsel %vm382, %v308, 0
      %v417 = vsel %vm382, %v309, 0
      %419 = vmatprep.subr.mxu0 %v291
      %420 = vmatpush1.msra.mxu0 %v290
      %421 = vmatprep.subr.mxu0 %v293
      %422 = vmatpush1.msra.mxu0 %v292
      %423 = vmatprep.subr.mxu0 %v295
      %424 = vmatpush1.msra.mxu0 %v294
      %425 = vmatprep.subr.mxu0 %v297
      %426 = vmatpush1.msra.mxu0 %v296
      %427 = vmatprep.subr.mxu0 0.0
      %428 = vmatpush1.msra.mxu0 0.0
      %429 = vmatprep.subr.mxu0 0.0
      %430 = vmatpush1.msra.mxu0 0.0
      %431 = vmatprep.subr.mxu0 0.0
      %432 = vmatpush1.msra.mxu0 0.0
      %433 = vmatprep.subr.mxu0 0.0
      %434 = vmatpush1.msra.mxu0 0.0
      %435 = vmatprep.subr.mxu0 0.0
      %436 = vmatpush1.msra.mxu0 0.0
      %437 = vmatprep.subr.mxu0 0.0
      %438 = vmatpush1.msra.mxu0 0.0
      %439 = vmatprep.subr.mxu0 0.0
      %440 = vmatpush1.msra.mxu0 0.0
      %441 = vmatprep.subr.mxu0 0.0
      %442 = vmatpush1.msra.mxu0 0.0
      %443 = vmatprep.subr.mxu0 0.0
      %444 = vmatpush1.msra.mxu0 0.0
      %445 = vmatprep.subr.mxu0 0.0
      %446 = vmatpush1.msra.mxu0 0.0
      %447 = vmatprep.subr.mxu0 0.0
      %448 = vmatpush1.msra.mxu0 0.0
      %449 = vmatprep.subr.mxu0 0.0
      %450 = vmatpush1.msra.mxu0 0.0
      %451 = vmatprep.subr.mxu0 0.0
      %452 = vmatpush1.msra.mxu0 0.0
      %453 = vmatprep.subr.mxu0 0.0
      %454 = vmatpush1.msra.mxu0 0.0
      %455 = vmatprep.subr.mxu0 0.0
      %456 = vmatpush1.msra.mxu0 0.0
      %457 = vmatprep.subr.mxu0 0.0
      %458 = vmatpush1.msra.mxu0 0.0
      %459 = vmatprep.subr.mxu0 0.0
      %460 = vmatpush1.msra.mxu0 0.0
      %461 = vmatprep.subr.mxu0 0.0
      %462 = vmatpush1.msra.mxu0 0.0
      %463 = vmatprep.subr.mxu0 0.0
      %464 = vmatpush1.msra.mxu0 0.0
      %465 = vmatprep.subr.mxu0 0.0
      %466 = vmatpush1.msra.mxu0 0.0
      %467 = vmatprep.subr.mxu0 0.0
      %468 = vmatpush1.msra.mxu0 0.0
      %469 = vmatprep.subr.mxu0 0.0
      %470 = vmatpush1.msra.mxu0 0.0
      %471 = vmatprep.subr.mxu0 0.0
      %472 = vmatpush1.msra.mxu0 0.0
      %473 = vmatprep.subr.mxu0 0.0
      %474 = vmatpush1.msra.mxu0 0.0
      %475 = vmatprep.subr.mxu0 0.0
      %476 = vmatpush1.msra.mxu0 0.0
      %477 = vmatprep.subr.mxu0 0.0
      %478 = vmatpush1.msra.mxu0 0.0
      %479 = vmatprep.subr.mxu0 0.0
      %480 = vmatpush1.msra.mxu0 0.0
      %481 = vmatprep.subr.mxu0 0.0
      %482 = vmatpush1.msra.mxu0 0.0
      %483 = vmatprep.mubr.f32.mxu0 0.0
      %484 = vmatmul.mubr.f32.gmra.mrb[0].mxu0 %v384
      %v485 = vpop.f32.mrb[0].mxu0
      %v486 = vadd.f32 %v325, %v485
      %v487 = vpop.f32.mrb[0].mxu0
      %v488 = vadd.f32 %v325, %v487
      %489 = vmatprep.mubr.f32.mxu0 0.0
      %490 = vmatmul.mubr.f32.gmra.mrb[0].mxu0 %v387
      %v491 = vpop.f32.mrb[0].mxu0
      %v492 = vadd.f32 %v330, %v491
      %v493 = vpop.f32.mrb[0].mxu0
      %v494 = vadd.f32 %v330, %v493
      %495 = vmatprep.mubr.f32.mxu0 0.0
      %496 = vmatmul.mubr.f32.gmra.mrb[0].mxu0 %v390
      %v497 = vpop.f32.mrb[0].mxu0
      %v498 = vadd.f32 %v335, %v497
      %v499 = vpop.f32.mrb[0].mxu0
      %v500 = vadd.f32 %v335, %v499
      %501 = vmatprep.mubr.f32.mxu0 0.0
      %502 = vmatmul.mubr.f32.gmra.mrb[0].mxu0 %v393
      %v503 = vpop.f32.mrb[0].mxu0
      %v504 = vadd.f32 %v340, %v503
      %v505 = vpop.f32.mrb[0].mxu0
      %v506 = vadd.f32 %v340, %v505
      %507 = vmatprep.mubr.f32.mxu0 0.0
      %508 = vmatmul.mubr.f32.gmra.mrb[0].mxu0 %v396
      %v509 = vpop.f32.mrb[0].mxu0
      %v510 = vadd.f32 %v345, %v509
      %v511 = vpop.f32.mrb[0].mxu0
      %v512 = vadd.f32 %v345, %v511
      %513 = vmatprep.mubr.f32.mxu0 0.0
      %514 = vmatmul.mubr.f32.gmra.mrb[0].mxu0 %v399
      %v515 = vpop.f32.mrb[0].mxu0
      %v516 = vadd.f32 %v350, %v515
      %v517 = vpop.f32.mrb[0].mxu0
      %v518 = vadd.f32 %v350, %v517
      %519 = vmatprep.mubr.f32.mxu0 0.0
      %520 = vmatmul.mubr.f32.gmra.mrb[0].mxu0 %v402
      %v521 = vpop.f32.mrb[0].mxu0
      %v522 = vadd.f32 %v355, %v521
      %v523 = vpop.f32.mrb[0].mxu0
      %v524 = vadd.f32 %v355, %v523
      %525 = vmatprep.mubr.f32.mxu0 0.0
      %526 = vmatmul.mubr.f32.gmra.mrb[0].mxu0 %v405
      %v527 = vpop.f32.mrb[0].mxu0
      %v528 = vadd.f32 %v360, %v527
      %v529 = vpop.f32.mrb[0].mxu0
      %v530 = vadd.f32 %v360, %v529
      %531 = vmatprep.mubr.f32.mxu0 0.0
      %532 = vmatmul.mubr.f32.gmra.mrb[0].mxu0 %v408
      %v533 = vpop.f32.mrb[0].mxu0
      %v534 = vadd.f32 %v365, %v533
      %v535 = vpop.f32.mrb[0].mxu0
      %v536 = vadd.f32 %v365, %v535
      %537 = vmatprep.mubr.f32.mxu0 0.0
      %538 = vmatmul.mubr.f32.gmra.mrb[0].mxu0 %v411
      %v539 = vpop.f32.mrb[0].mxu0
      %v540 = vadd.f32 %v370, %v539
      %v541 = vpop.f32.mrb[0].mxu0
      %v542 = vadd.f32 %v370, %v541
      %543 = vmatprep.mubr.f32.mxu0 0.0
      %544 = vmatmul.mubr.f32.gmra.mrb[0].mxu0 %v414
      %v545 = vpop.f32.mrb[0].mxu0
      %v546 = vadd.f32 %v375, %v545
      %v547 = vpop.f32.mrb[0].mxu0
      %v548 = vadd.f32 %v375, %v547
      %549 = vmatprep.mubr.f32.mxu0 0.0
      %550 = vmatmul.mubr.f32.gmra.mrb[0].mxu0 %v417
      %v551 = vpop.f32.mrb[0].mxu0
      %v552 = vadd.f32 %v380, %v551
      %v553 = vpop.f32.mrb[0].mxu0
      %v554 = vadd.f32 %v380, %v553
      %555 = vdwg.mxu0
      %v556 = vld [vmem:[%s4] sm:$0xff]
      %v557 = vld [vmem:[%s4 + $0x8] sm:$0xff]
      %v558 = vld [vmem:[%s4 + $0x10] sm:$0xff]
      %v559 = vld [vmem:[%s4 + $0x18] sm:$0xff]
      %561 = vset.pattern.permute.xlu0 0
      %562 = vperm.xlu0 %561, %v556
      %v563 = vpop.permute.xlu0 %562
      %566 = vset.pattern.permute.xlu0 0
      %567 = vperm.xlu0 %566, %v557
      %v568 = vpop.permute.xlu0 %567
      %571 = vset.pattern.permute.xlu0 0
      %572 = vperm.xlu0 %571, %v558
      %v573 = vpop.permute.xlu0 %572
      %576 = vset.pattern.permute.xlu0 0
      %577 = vperm.xlu0 %576, %v559
      %v578 = vpop.permute.xlu0 %577
      %v580 = vadd.f32 %v225, %v563
      %v581 = vadd.f32 %v226, %v563
      %v582 = vadd.f32 %v227, %v568
      %v583 = vadd.f32 %v228, %v568
      %v584 = vadd.f32 %v229, %v573
      %v585 = vadd.f32 %v230, %v573
      %v586 = vadd.f32 %v231, %v578
      %v587 = vadd.f32 %v232, %v578
      %588 = vxpose.xlu0.b32.start [1/16] %v510, 128
      %589 = vxpose.xlu0.b32.cont [2/16] %v516, 128
      %590 = vxpose.xlu0.b32.cont [3/16] %v522, 128
      %591 = vxpose.xlu0.b32.cont [4/16] %v528, 128
      %592 = vxpose.xlu0.b32.cont [5/16] 0.0, 128
      %593 = vxpose.xlu0.b32.cont [6/16] 0.0, 128
      %594 = vxpose.xlu0.b32.cont [7/16] 0.0, 128
      %595 = vxpose.xlu0.b32.cont [8/16] 0.0, 128
      %596 = vxpose.xlu0.b32.cont [9/16] 0.0, 128
      %597 = vxpose.xlu0.b32.cont [10/16] 0.0, 128
      %598 = vxpose.xlu0.b32.cont [11/16] 0.0, 128
      %599 = vxpose.xlu0.b32.cont [12/16] 0.0, 128
      %600 = vxpose.xlu0.b32.cont [13/16] 0.0, 128
      %601 = vxpose.xlu0.b32.cont [14/16] 0.0, 128
      %602 = vxpose.xlu0.b32.cont [15/16] 0.0, 128
      %603 = vxpose.xlu0.b32.end [16/16] 0.0, 128
      %v604 = vpop.trf.xlu0
      %v605 = vpop.trf.xlu0
      %v606 = vpop.trf.xlu0
      %v607 = vpop.trf.xlu0
      %v608 = vpop.trf.xlu0
      %v609 = vpop.trf.xlu0
      %v610 = vpop.trf.xlu0
      %v611 = vpop.trf.xlu0
      %v612 = vpop.trf.xlu0
      %v613 = vpop.trf.xlu0
      %v614 = vpop.trf.xlu0
      %v615 = vpop.trf.xlu0
      %v616 = vpop.trf.xlu0
      %v617 = vpop.trf.xlu0
      %v618 = vpop.trf.xlu0
      %v619 = vpop.trf.xlu0
      %620 = vxpose.xlu0.b32.start [1/16] %v512, 128
      %621 = vxpose.xlu0.b32.cont [2/16] %v518, 128
      %622 = vxpose.xlu0.b32.cont [3/16] %v524, 128
      %623 = vxpose.xlu0.b32.cont [4/16] %v530, 128
      %624 = vxpose.xlu0.b32.cont [5/16] 0.0, 128
      %625 = vxpose.xlu0.b32.cont [6/16] 0.0, 128
      %626 = vxpose.xlu0.b32.cont [7/16] 0.0, 128
      %627 = vxpose.xlu0.b32.cont [8/16] 0.0, 128
      %628 = vxpose.xlu0.b32.cont [9/16] 0.0, 128
      %629 = vxpose.xlu0.b32.cont [10/16] 0.0, 128
      %630 = vxpose.xlu0.b32.cont [11/16] 0.0, 128
      %631 = vxpose.xlu0.b32.cont [12/16] 0.0, 128
      %632 = vxpose.xlu0.b32.cont [13/16] 0.0, 128
      %633 = vxpose.xlu0.b32.cont [14/16] 0.0, 128
      %634 = vxpose.xlu0.b32.cont [15/16] 0.0, 128
      %635 = vxpose.xlu0.b32.end [16/16] 0.0, 128
      %v636 = vpop.trf.xlu0
      %v637 = vpop.trf.xlu0
      %v638 = vpop.trf.xlu0
      %v639 = vpop.trf.xlu0
      %v640 = vpop.trf.xlu0
      %v641 = vpop.trf.xlu0
      %v642 = vpop.trf.xlu0
      %v643 = vpop.trf.xlu0
      %v644 = vpop.trf.xlu0
      %v645 = vpop.trf.xlu0
      %v646 = vpop.trf.xlu0
      %v647 = vpop.trf.xlu0
      %v648 = vpop.trf.xlu0
      %v649 = vpop.trf.xlu0
      %v650 = vpop.trf.xlu0
      %v651 = vpop.trf.xlu0
      %v653 = vsel %vm382, %v604, 0
      %v656 = vsel %vm382, %v605, 0
      %v659 = vsel %vm382, %v606, 0
      %v662 = vsel %vm382, %v607, 0
      %v665 = vsel %vm382, %v608, 0
      %v668 = vsel %vm382, %v609, 0
      %v671 = vsel %vm382, %v610, 0
      %v674 = vsel %vm382, %v611, 0
      %v677 = vsel %vm382, %v612, 0
      %v680 = vsel %vm382, %v613, 0
      %v683 = vsel %vm382, %v614, 0
      %v686 = vsel %vm382, %v615, 0
      %v689 = vsel %vm382, %v616, 0
      %v692 = vsel %vm382, %v617, 0
      %v695 = vsel %vm382, %v618, 0
      %v698 = vsel %vm382, %v619, 0
      %v701 = vsel %vm382, %v636, 0
      %v704 = vsel %vm382, %v637, 0
      %v707 = vsel %vm382, %v638, 0
      %v710 = vsel %vm382, %v639, 0
      %v713 = vsel %vm382, %v640, 0
      %v716 = vsel %vm382, %v641, 0
      %v719 = vsel %vm382, %v642, 0
      %v722 = vsel %vm382, %v643, 0
      %v725 = vsel %vm382, %v644, 0
      %v728 = vsel %vm382, %v645, 0
      %v731 = vsel %vm382, %v646, 0
      %v734 = vsel %vm382, %v647, 0
      %v737 = vsel %vm382, %v648, 0
      %v740 = vsel %vm382, %v649, 0
      %v743 = vsel %vm382, %v650, 0
      %v746 = vsel %vm382, %v651, 0
      %748 = vmatprep.subr.mxu0 %v488
      %749 = vmatpush1.msra.mxu0 %v486
      %750 = vmatprep.subr.mxu0 %v494
      %751 = vmatpush1.msra.mxu0 %v492
      %752 = vmatprep.subr.mxu0 %v500
      %753 = vmatpush1.msra.mxu0 %v498
      %754 = vmatprep.subr.mxu0 %v506
      %755 = vmatpush1.msra.mxu0 %v504
      %756 = vmatprep.subr.mxu0 0.0
      %757 = vmatpush1.msra.mxu0 0.0
      %758 = vmatprep.subr.mxu0 0.0
      %759 = vmatpush1.msra.mxu0 0.0
      %760 = vmatprep.subr.mxu0 0.0
      %761 = vmatpush1.msra.mxu0 0.0
      %762 = vmatprep.subr.mxu0 0.0
      %763 = vmatpush1.msra.mxu0 0.0
      %764 = vmatprep.subr.mxu0 0.0
      %765 = vmatpush1.msra.mxu0 0.0
      %766 = vmatprep.subr.mxu0 0.0
      %767 = vmatpush1.msra.mxu0 0.0
      %768 = vmatprep.subr.mxu0 0.0
      %769 = vmatpush1.msra.mxu0 0.0
      %770 = vmatprep.subr.mxu0 0.0
      %771 = vmatpush1.msra.mxu0 0.0
      %772 = vmatprep.subr.mxu0 0.0
      %773 = vmatpush1.msra.mxu0 0.0
      %774 = vmatprep.subr.mxu0 0.0
      %775 = vmatpush1.msra.mxu0 0.0
      %776 = vmatprep.subr.mxu0 0.0
      %777 = vmatpush1.msra.mxu0 0.0
      %778 = vmatprep.subr.mxu0 0.0
      %779 = vmatpush1.msra.mxu0 0.0
      %780 = vmatprep.subr.mxu0 0.0
      %781 = vmatpush1.msra.mxu0 0.0
      %782 = vmatprep.subr.mxu0 0.0
      %783 = vmatpush1.msra.mxu0 0.0
      %784 = vmatprep.subr.mxu0 0.0
      %785 = vmatpush1.msra.mxu0 0.0
      %786 = vmatprep.subr.mxu0 0.0
      %787 = vmatpush1.msra.mxu0 0.0
      %788 = vmatprep.subr.mxu0 0.0
      %789 = vmatpush1.msra.mxu0 0.0
      %790 = vmatprep.subr.mxu0 0.0
      %791 = vmatpush1.msra.mxu0 0.0
      %792 = vmatprep.subr.mxu0 0.0
      %793 = vmatpush1.msra.mxu0 0.0
      %794 = vmatprep.subr.mxu0 0.0
      %795 = vmatpush1.msra.mxu0 0.0
      %796 = vmatprep.subr.mxu0 0.0
      %797 = vmatpush1.msra.mxu0 0.0
      %798 = vmatprep.subr.mxu0 0.0
      %799 = vmatpush1.msra.mxu0 0.0
      %800 = vmatprep.subr.mxu0 0.0
      %801 = vmatpush1.msra.mxu0 0.0
      %802 = vmatprep.subr.mxu0 0.0
      %803 = vmatpush1.msra.mxu0 0.0
      %804 = vmatprep.subr.mxu0 0.0
      %805 = vmatpush1.msra.mxu0 0.0
      %806 = vmatprep.subr.mxu0 0.0
      %807 = vmatpush1.msra.mxu0 0.0
      %808 = vmatprep.subr.mxu0 0.0
      %809 = vmatpush1.msra.mxu0 0.0
      %810 = vmatprep.subr.mxu0 0.0
      %811 = vmatpush1.msra.mxu0 0.0
      %812 = vmatprep.mubr.f32.mxu0 0.0
      %813 = vmatmul.mubr.f32.gmra.mrb[0].mxu0 %v653
      %v814 = vpop.f32.mrb[0].mxu0
      %v815 = vadd.f32 0.0, %v814
      %v816 = vpop.f32.mrb[0].mxu0
      %v817 = vadd.f32 0.0, %v816
      %818 = vmatprep.mubr.f32.mxu0 0.0
      %819 = vmatmul.mubr.f32.gmra.mrb[0].mxu0 %v656
      %v820 = vpop.f32.mrb[0].mxu0
      %v821 = vadd.f32 0.0, %v820
      %v822 = vpop.f32.mrb[0].mxu0
      %v823 = vadd.f32 0.0, %v822
      %824 = vmatprep.mubr.f32.mxu0 0.0
      %825 = vmatmul.mubr.f32.gmra.mrb[0].mxu0 %v659
      %v826 = vpop.f32.mrb[0].mxu0
      %v827 = vadd.f32 0.0, %v826
      %v828 = vpop.f32.mrb[0].mxu0
      %v829 = vadd.f32 0.0, %v828
      %830 = vmatprep.mubr.f32.mxu0 0.0
      %831 = vmatmul.mubr.f32.gmra.mrb[0].mxu0 %v662
      %v832 = vpop.f32.mrb[0].mxu0
      %v833 = vadd.f32 0.0, %v832
      %v834 = vpop.f32.mrb[0].mxu0
      %v835 = vadd.f32 0.0, %v834
      %836 = vmatprep.mubr.f32.mxu0 0.0
      %837 = vmatmul.mubr.f32.gmra.mrb[0].mxu0 %v665
      %v838 = vpop.f32.mrb[0].mxu0
      %v839 = vadd.f32 0.0, %v838
      %v840 = vpop.f32.mrb[0].mxu0
      %v841 = vadd.f32 0.0, %v840
      %842 = vmatprep.mubr.f32.mxu0 0.0
      %843 = vmatmul.mubr.f32.gmra.mrb[0].mxu0 %v668
      %v844 = vpop.f32.mrb[0].mxu0
      %v845 = vadd.f32 0.0, %v844
      %v846 = vpop.f32.mrb[0].mxu0
      %v847 = vadd.f32 0.0, %v846
      %848 = vmatprep.mubr.f32.mxu0 0.0
      %849 = vmatmul.mubr.f32.gmra.mrb[0].mxu0 %v671
      %v850 = vpop.f32.mrb[0].mxu0
      %v851 = vadd.f32 0.0, %v850
      %v852 = vpop.f32.mrb[0].mxu0
      %v853 = vadd.f32 0.0, %v852
      %854 = vmatprep.mubr.f32.mxu0 0.0
      %855 = vmatmul.mubr.f32.gmra.mrb[0].mxu0 %v674
      %v856 = vpop.f32.mrb[0].mxu0
      %v857 = vadd.f32 0.0, %v856
      %v858 = vpop.f32.mrb[0].mxu0
      %v859 = vadd.f32 0.0, %v858
      %860 = vmatprep.mubr.f32.mxu0 0.0
      %861 = vmatmul.mubr.f32.gmra.mrb[0].mxu0 %v677
      %v862 = vpop.f32.mrb[0].mxu0
      %v863 = vadd.f32 0.0, %v862
      %v864 = vpop.f32.mrb[0].mxu0
      %v865 = vadd.f32 0.0, %v864
      %866 = vmatprep.mubr.f32.mxu0 0.0
      %867 = vmatmul.mubr.f32.gmra.mrb[0].mxu0 %v680
      %v868 = vpop.f32.mrb[0].mxu0
      %v869 = vadd.f32 0.0, %v868
      %v870 = vpop.f32.mrb[0].mxu0
      %v871 = vadd.f32 0.0, %v870
      %872 = vmatprep.mubr.f32.mxu0 0.0
      %873 = vmatmul.mubr.f32.gmra.mrb[0].mxu0 %v683
      %v874 = vpop.f32.mrb[0].mxu0
      %v875 = vadd.f32 0.0, %v874
      %v876 = vpop.f32.mrb[0].mxu0
      %v877 = vadd.f32 0.0, %v876
      %878 = vmatprep.mubr.f32.mxu0 0.0
      %879 = vmatmul.mubr.f32.gmra.mrb[0].mxu0 %v686
      %v880 = vpop.f32.mrb[0].mxu0
      %v881 = vadd.f32 0.0, %v880
      %v882 = vpop.f32.mrb[0].mxu0
      %v883 = vadd.f32 0.0, %v882
      %884 = vmatprep.mubr.f32.mxu0 0.0
      %885 = vmatmul.mubr.f32.gmra.mrb[0].mxu0 %v689
      %v886 = vpop.f32.mrb[0].mxu0
      %v887 = vadd.f32 0.0, %v886
      %v888 = vpop.f32.mrb[0].mxu0
      %v889 = vadd.f32 0.0, %v888
      %890 = vmatprep.mubr.f32.mxu0 0.0
      %891 = vmatmul.mubr.f32.gmra.mrb[0].mxu0 %v692
      %v892 = vpop.f32.mrb[0].mxu0
      %v893 = vadd.f32 0.0, %v892
      %v894 = vpop.f32.mrb[0].mxu0
      %v895 = vadd.f32 0.0, %v894
      %896 = vmatprep.mubr.f32.mxu0 0.0
      %897 = vmatmul.mubr.f32.gmra.mrb[0].mxu0 %v695
      %v898 = vpop.f32.mrb[0].mxu0
      %v899 = vadd.f32 0.0, %v898
      %v900 = vpop.f32.mrb[0].mxu0
      %v901 = vadd.f32 0.0, %v900
      %902 = vmatprep.mubr.f32.mxu0 0.0
      %903 = vmatmul.mubr.f32.gmra.mrb[0].mxu0 %v698
      %v904 = vpop.f32.mrb[0].mxu0
      %v905 = vadd.f32 0.0, %v904
      %v906 = vpop.f32.mrb[0].mxu0
      %v907 = vadd.f32 0.0, %v906
      %908 = vmatprep.mubr.f32.mxu0 0.0
      %909 = vmatmul.mubr.f32.gmra.mrb[0].mxu0 %v701
      %v910 = vpop.f32.mrb[0].mxu0
      %v911 = vadd.f32 0.0, %v910
      %v912 = vpop.f32.mrb[0].mxu0
      %v913 = vadd.f32 0.0, %v912
      %914 = vmatprep.mubr.f32.mxu0 0.0
      %915 = vmatmul.mubr.f32.gmra.mrb[0].mxu0 %v704
      %v916 = vpop.f32.mrb[0].mxu0
      %v917 = vadd.f32 0.0, %v916
      %v918 = vpop.f32.mrb[0].mxu0
      %v919 = vadd.f32 0.0, %v918
      %920 = vmatprep.mubr.f32.mxu0 0.0
      %921 = vmatmul.mubr.f32.gmra.mrb[0].mxu0 %v707
      %v922 = vpop.f32.mrb[0].mxu0
      %v923 = vadd.f32 0.0, %v922
      %v924 = vpop.f32.mrb[0].mxu0
      %v925 = vadd.f32 0.0, %v924
      %926 = vmatprep.mubr.f32.mxu0 0.0
      %927 = vmatmul.mubr.f32.gmra.mrb[0].mxu0 %v710
      %v928 = vpop.f32.mrb[0].mxu0
      %v929 = vadd.f32 0.0, %v928
      %v930 = vpop.f32.mrb[0].mxu0
      %v931 = vadd.f32 0.0, %v930
      %932 = vmatprep.mubr.f32.mxu0 0.0
      %933 = vmatmul.mubr.f32.gmra.mrb[0].mxu0 %v713
      %v934 = vpop.f32.mrb[0].mxu0
      %v935 = vadd.f32 0.0, %v934
      %v936 = vpop.f32.mrb[0].mxu0
      %v937 = vadd.f32 0.0, %v936
      %938 = vmatprep.mubr.f32.mxu0 0.0
      %939 = vmatmul.mubr.f32.gmra.mrb[0].mxu0 %v716
      %v940 = vpop.f32.mrb[0].mxu0
      %v941 = vadd.f32 0.0, %v940
      %v942 = vpop.f32.mrb[0].mxu0
      %v943 = vadd.f32 0.0, %v942
      %944 = vmatprep.mubr.f32.mxu0 0.0
      %945 = vmatmul.mubr.f32.gmra.mrb[0].mxu0 %v719
      %v946 = vpop.f32.mrb[0].mxu0
      %v947 = vadd.f32 0.0, %v946
      %v948 = vpop.f32.mrb[0].mxu0
      %v949 = vadd.f32 0.0, %v948
      %950 = vmatprep.mubr.f32.mxu0 0.0
      %951 = vmatmul.mubr.f32.gmra.mrb[0].mxu0 %v722
      %v952 = vpop.f32.mrb[0].mxu0
      %v953 = vadd.f32 0.0, %v952
      %v954 = vpop.f32.mrb[0].mxu0
      %v955 = vadd.f32 0.0, %v954
      %956 = vmatprep.mubr.f32.mxu0 0.0
      %957 = vmatmul.mubr.f32.gmra.mrb[0].mxu0 %v725
      %v958 = vpop.f32.mrb[0].mxu0
      %v959 = vadd.f32 0.0, %v958
      %v960 = vpop.f32.mrb[0].mxu0
      %v961 = vadd.f32 0.0, %v960
      %962 = vmatprep.mubr.f32.mxu0 0.0
      %963 = vmatmul.mubr.f32.gmra.mrb[0].mxu0 %v728
      %v964 = vpop.f32.mrb[0].mxu0
      %v965 = vadd.f32 0.0, %v964
      %v966 = vpop.f32.mrb[0].mxu0
      %v967 = vadd.f32 0.0, %v966
      %968 = vmatprep.mubr.f32.mxu0 0.0
      %969 = vmatmul.mubr.f32.gmra.mrb[0].mxu0 %v731
      %v970 = vpop.f32.mrb[0].mxu0
      %v971 = vadd.f32 0.0, %v970
      %v972 = vpop.f32.mrb[0].mxu0
      %v973 = vadd.f32 0.0, %v972
      %974 = vmatprep.mubr.f32.mxu0 0.0
      %975 = vmatmul.mubr.f32.gmra.mrb[0].mxu0 %v734
      %v976 = vpop.f32.mrb[0].mxu0
      %v977 = vadd.f32 0.0, %v976
      %v978 = vpop.f32.mrb[0].mxu0
      %v979 = vadd.f32 0.0, %v978
      %980 = vmatprep.mubr.f32.mxu0 0.0
      %981 = vmatmul.mubr.f32.gmra.mrb[0].mxu0 %v737
      %v982 = vpop.f32.mrb[0].mxu0
      %v983 = vadd.f32 0.0, %v982
      %v984 = vpop.f32.mrb[0].mxu0
      %v985 = vadd.f32 0.0, %v984
      %986 = vmatprep.mubr.f32.mxu0 0.0
      %987 = vmatmul.mubr.f32.gmra.mrb[0].mxu0 %v740
      %v988 = vpop.f32.mrb[0].mxu0
      %v989 = vadd.f32 0.0, %v988
      %v990 = vpop.f32.mrb[0].mxu0
      %v991 = vadd.f32 0.0, %v990
      %992 = vmatprep.mubr.f32.mxu0 0.0
      %993 = vmatmul.mubr.f32.gmra.mrb[0].mxu0 %v743
      %v994 = vpop.f32.mrb[0].mxu0
      %v995 = vadd.f32 0.0, %v994
      %v996 = vpop.f32.mrb[0].mxu0
      %v997 = vadd.f32 0.0, %v996
      %998 = vmatprep.mubr.f32.mxu0 0.0
      %999 = vmatmul.mubr.f32.gmra.mrb[0].mxu0 %v746
      %v1000 = vpop.f32.mrb[0].mxu0
      %v1001 = vadd.f32 0.0, %v1000
      %v1002 = vpop.f32.mrb[0].mxu0
      %v1003 = vadd.f32 0.0, %v1002
      %1004 = vdwg.mxu0
      %v1005 = vmax.f32 %v815, %v827
      %v1006 = vmax.f32 %v821, %v833
      %v1007 = vmax.f32 %v1005, %v839
      %v1008 = vmax.f32 %v1006, %v845
      %v1009 = vmax.f32 %v1007, %v851
      %v1010 = vmax.f32 %v1008, %v857
      %v1011 = vmax.f32 %v1009, %v863
      %v1012 = vmax.f32 %v1010, %v869
      %v1013 = vmax.f32 %v1011, %v875
      %v1014 = vmax.f32 %v1012, %v881
      %v1015 = vmax.f32 %v1013, %v887
      %v1016 = vmax.f32 %v1014, %v893
      %v1017 = vmax.f32 %v1015, %v899
      %v1018 = vmax.f32 %v1016, %v905
      %v1019 = vmax.f32 %v1017, %v911
      %v1020 = vmax.f32 %v1018, %v917
      %v1021 = vmax.f32 %v1019, %v923
      %v1022 = vmax.f32 %v1020, %v929
      %v1023 = vmax.f32 %v1021, %v935
      %v1024 = vmax.f32 %v1022, %v941
      %v1025 = vmax.f32 %v1023, %v947
      %v1026 = vmax.f32 %v1024, %v953
      %v1027 = vmax.f32 %v1025, %v959
      %v1028 = vmax.f32 %v1026, %v965
      %v1029 = vmax.f32 %v1027, %v971
      %v1030 = vmax.f32 %v1028, %v977
      %v1031 = vmax.f32 %v1029, %v983
      %v1032 = vmax.f32 %v1030, %v989
      %v1033 = vmax.f32 %v1031, %v995
      %v1034 = vmax.f32 %v1032, %v1001
      %v1035 = vmax.f32 %v1033, %v1034
      %v1036 = vrot.slane %v1035, 4
      %v1037 = vmax.f32 %v1035, %v1036
      %v1038 = vrot.slane %v1037, 2
      %v1039 = vmax.f32 %v1037, %v1038
      %v1040 = vrot.slane %v1039, 1
      %v1041 = vmax.f32 %v1039, %v1040
      %v1042 = vmax.f32 %v817, %v829
      %v1043 = vmax.f32 %v823, %v835
      %v1044 = vmax.f32 %v1042, %v841
      %v1045 = vmax.f32 %v1043, %v847
      %v1046 = vmax.f32 %v1044, %v853
      %v1047 = vmax.f32 %v1045, %v859
      %v1048 = vmax.f32 %v1046, %v865
      %v1049 = vmax.f32 %v1047, %v871
      %v1050 = vmax.f32 %v1048, %v877
      %v1051 = vmax.f32 %v1049, %v883
      %v1052 = vmax.f32 %v1050, %v889
      %v1053 = vmax.f32 %v1051, %v895
      %v1054 = vmax.f32 %v1052, %v901
      %v1055 = vmax.f32 %v1053, %v907
      %v1056 = vmax.f32 %v1054, %v913
      %v1057 = vmax.f32 %v1055, %v919
      %v1058 = vmax.f32 %v1056, %v925
      %v1059 = vmax.f32 %v1057, %v931
      %v1060 = vmax.f32 %v1058, %v937
      %v1061 = vmax.f32 %v1059, %v943
      %v1062 = vmax.f32 %v1060, %v949
      %v1063 = vmax.f32 %v1061, %v955
      %v1064 = vmax.f32 %v1062, %v961
      %v1065 = vmax.f32 %v1063, %v967
      %v1066 = vmax.f32 %v1064, %v973
      %v1067 = vmax.f32 %v1065, %v979
      %v1068 = vmax.f32 %v1066, %v985
      %v1069 = vmax.f32 %v1067, %v991
      %v1070 = vmax.f32 %v1068, %v997
      %v1071 = vmax.f32 %v1069, %v1003
      %v1072 = vmax.f32 %v1070, %v1071
      %v1073 = vrot.slane %v1072, 4
      %v1074 = vmax.f32 %v1072, %v1073
      %v1075 = vrot.slane %v1074, 2
      %v1076 = vmax.f32 %v1074, %v1075
      %v1077 = vrot.slane %v1076, 1
      %v1078 = vmax.f32 %v1076, %v1077
      %v1079 = vsub.f32 %v815, %v1041
      %v1080 = vsub.f32 %v817, %v1078
      %v1081 = vsub.f32 %v821, %v1041
      %v1082 = vsub.f32 %v823, %v1078
      %v1083 = vsub.f32 %v827, %v1041
      %v1084 = vsub.f32 %v829, %v1078
      %v1085 = vsub.f32 %v833, %v1041
      %v1086 = vsub.f32 %v835, %v1078
      %v1087 = vsub.f32 %v839, %v1041
      %v1088 = vsub.f32 %v841, %v1078
      %v1089 = vsub.f32 %v845, %v1041
      %v1090 = vsub.f32 %v847, %v1078
      %v1091 = vsub.f32 %v851, %v1041
      %v1092 = vsub.f32 %v853, %v1078
      %v1093 = vsub.f32 %v857, %v1041
      %v1094 = vsub.f32 %v859, %v1078
      %v1095 = vsub.f32 %v863, %v1041
      %v1096 = vsub.f32 %v865, %v1078
      %v1097 = vsub.f32 %v869, %v1041
      %v1098 = vsub.f32 %v871, %v1078
      %v1099 = vsub.f32 %v875, %v1041
      %v1100 = vsub.f32 %v877, %v1078
      %v1101 = vsub.f32 %v881, %v1041
      %v1102 = vsub.f32 %v883, %v1078
      %v1103 = vsub.f32 %v887, %v1041
      %v1104 = vsub.f32 %v889, %v1078
      %v1105 = vsub.f32 %v893, %v1041
      %v1106 = vsub.f32 %v895, %v1078
      %v1107 = vsub.f32 %v899, %v1041
      %v1108 = vsub.f32 %v901, %v1078
      %v1109 = vsub.f32 %v905, %v1041
      %v1110 = vsub.f32 %v907, %v1078
      %v1111 = vsub.f32 %v911, %v1041
      %v1112 = vsub.f32 %v913, %v1078
      %v1113 = vsub.f32 %v917, %v1041
      %v1114 = vsub.f32 %v919, %v1078
      %v1115 = vsub.f32 %v923, %v1041
      %v1116 = vsub.f32 %v925, %v1078
      %v1117 = vsub.f32 %v929, %v1041
      %v1118 = vsub.f32 %v931, %v1078
      %v1119 = vsub.f32 %v935, %v1041
      %v1120 = vsub.f32 %v937, %v1078
      %v1121 = vsub.f32 %v941, %v1041
      %v1122 = vsub.f32 %v943, %v1078
      %v1123 = vsub.f32 %v947, %v1041
      %v1124 = vsub.f32 %v949, %v1078
      %v1125 = vsub.f32 %v953, %v1041
      %v1126 = vsub.f32 %v955, %v1078
      %v1127 = vsub.f32 %v959, %v1041
      %v1128 = vsub.f32 %v961, %v1078
      %v1129 = vsub.f32 %v965, %v1041
      %v1130 = vsub.f32 %v967, %v1078
      %v1131 = vsub.f32 %v971, %v1041
      %v1132 = vsub.f32 %v973, %v1078
      %v1133 = vsub.f32 %v977, %v1041
      %v1134 = vsub.f32 %v979, %v1078
      %v1135 = vsub.f32 %v983, %v1041
      %v1136 = vsub.f32 %v985, %v1078
      %v1137 = vsub.f32 %v989, %v1041
      %v1138 = vsub.f32 %v991, %v1078
      %v1139 = vsub.f32 %v995, %v1041
      %v1140 = vsub.f32 %v997, %v1078
      %v1141 = vsub.f32 %v1001, %v1041
      %v1142 = vsub.f32 %v1003, %v1078
      %v1143 = vmul.f32 %v1079, 1.442695
      %v1144 = vpow.pop %v1143
      %v1145 = vmul.f32 %v1080, 1.442695
      %v1146 = vpow.pop %v1145
      %v1147 = vmul.f32 %v1081, 1.442695
      %v1148 = vpow.pop %v1147
      %v1149 = vmul.f32 %v1082, 1.442695
      %v1150 = vpow.pop %v1149
      %v1151 = vmul.f32 %v1083, 1.442695
      %v1152 = vpow.pop %v1151
      %v1153 = vmul.f32 %v1084, 1.442695
      %v1154 = vpow.pop %v1153
      %v1155 = vmul.f32 %v1085, 1.442695
      %v1156 = vpow.pop %v1155
      %v1157 = vmul.f32 %v1086, 1.442695
      %v1158 = vpow.pop %v1157
      %v1159 = vmul.f32 %v1087, 1.442695
      %v1160 = vpow.pop %v1159
      %v1161 = vmul.f32 %v1088, 1.442695
      %v1162 = vpow.pop %v1161
      %v1163 = vmul.f32 %v1089, 1.442695
      %v1164 = vpow.pop %v1163
      %v1165 = vmul.f32 %v1090, 1.442695
      %v1166 = vpow.pop %v1165
      %v1167 = vmul.f32 %v1091, 1.442695
      %v1168 = vpow.pop %v1167
      %v1169 = vmul.f32 %v1092, 1.442695
      %v1170 = vpow.pop %v1169
      %v1171 = vmul.f32 %v1093, 1.442695
      %v1172 = vpow.pop %v1171
      %v1173 = vmul.f32 %v1094, 1.442695
      %v1174 = vpow.pop %v1173
      %v1175 = vmul.f32 %v1095, 1.442695
      %v1176 = vpow.pop %v1175
      %v1177 = vmul.f32 %v1096, 1.442695
      %v1178 = vpow.pop %v1177
      %v1179 = vmul.f32 %v1097, 1.442695
      %v1180 = vpow.pop %v1179
      %v1181 = vmul.f32 %v1098, 1.442695
      %v1182 = vpow.pop %v1181
      %v1183 = vmul.f32 %v1099, 1.442695
      %v1184 = vpow.pop %v1183
      %v1185 = vmul.f32 %v1100, 1.442695
      %v1186 = vpow.pop %v1185
      %v1187 = vmul.f32 %v1101, 1.442695
      %v1188 = vpow.pop %v1187
      %v1189 = vmul.f32 %v1102, 1.442695
      %v1190 = vpow.pop %v1189
      %v1191 = vmul.f32 %v1103, 1.442695
      %v1192 = vpow.pop %v1191
      %v1193 = vmul.f32 %v1104, 1.442695
      %v1194 = vpow.pop %v1193
      %v1195 = vmul.f32 %v1105, 1.442695
      %v1196 = vpow.pop %v1195
      %v1197 = vmul.f32 %v1106, 1.442695
      %v1198 = vpow.pop %v1197
      %v1199 = vmul.f32 %v1107, 1.442695
      %v1200 = vpow.pop %v1199
      %v1201 = vmul.f32 %v1108, 1.442695
      %v1202 = vpow.pop %v1201
      %v1203 = vmul.f32 %v1109, 1.442695
      %v1204 = vpow.pop %v1203
      %v1205 = vmul.f32 %v1110, 1.442695
      %v1206 = vpow.pop %v1205
      %v1207 = vmul.f32 %v1111, 1.442695
      %v1208 = vpow.pop %v1207
      %v1209 = vmul.f32 %v1112, 1.442695
      %v1210 = vpow.pop %v1209
      %v1211 = vmul.f32 %v1113, 1.442695
      %v1212 = vpow.pop %v1211
      %v1213 = vmul.f32 %v1114, 1.442695
      %v1214 = vpow.pop %v1213
      %v1215 = vmul.f32 %v1115, 1.442695
      %v1216 = vpow.pop %v1215
      %v1217 = vmul.f32 %v1116, 1.442695
      %v1218 = vpow.pop %v1217
      %v1219 = vmul.f32 %v1117, 1.442695
      %v1220 = vpow.pop %v1219
      %v1221 = vmul.f32 %v1118, 1.442695
      %v1222 = vpow.pop %v1221
      %v1223 = vmul.f32 %v1119, 1.442695
      %v1224 = vpow.pop %v1223
      %v1225 = vmul.f32 %v1120, 1.442695
      %v1226 = vpow.pop %v1225
      %v1227 = vmul.f32 %v1121, 1.442695
      %v1228 = vpow.pop %v1227
      %v1229 = vmul.f32 %v1122, 1.442695
      %v1230 = vpow.pop %v1229
      %v1231 = vmul.f32 %v1123, 1.442695
      %v1232 = vpow.pop %v1231
      %v1233 = vmul.f32 %v1124, 1.442695
      %v1234 = vpow.pop %v1233
      %v1235 = vmul.f32 %v1125, 1.442695
      %v1236 = vpow.pop %v1235
      %v1237 = vmul.f32 %v1126, 1.442695
      %v1238 = vpow.pop %v1237
      %v1239 = vmul.f32 %v1127, 1.442695
      %v1240 = vpow.pop %v1239
      %v1241 = vmul.f32 %v1128, 1.442695
      %v1242 = vpow.pop %v1241
      %v1243 = vmul.f32 %v1129, 1.442695
      %v1244 = vpow.pop %v1243
      %v1245 = vmul.f32 %v1130, 1.442695
      %v1246 = vpow.pop %v1245
      %v1247 = vmul.f32 %v1131, 1.442695
      %v1248 = vpow.pop %v1247
      %v1249 = vmul.f32 %v1132, 1.442695
      %v1250 = vpow.pop %v1249
      %v1251 = vmul.f32 %v1133, 1.442695
      %v1252 = vpow.pop %v1251
      %v1253 = vmul.f32 %v1134, 1.442695
      %v1254 = vpow.pop %v1253
      %v1255 = vmul.f32 %v1135, 1.442695
      %v1256 = vpow.pop %v1255
      %v1257 = vmul.f32 %v1136, 1.442695
      %v1258 = vpow.pop %v1257
      %v1259 = vmul.f32 %v1137, 1.442695
      %v1260 = vpow.pop %v1259
      %v1261 = vmul.f32 %v1138, 1.442695
      %v1262 = vpow.pop %v1261
      %v1263 = vmul.f32 %v1139, 1.442695
      %v1264 = vpow.pop %v1263
      %v1265 = vmul.f32 %v1140, 1.442695
      %v1266 = vpow.pop %v1265
      %v1267 = vmul.f32 %v1141, 1.442695
      %v1268 = vpow.pop %v1267
      %v1269 = vmul.f32 %v1142, 1.442695
      %v1270 = vpow.pop %v1269
      %v1271 = vadd.f32 %v1144, %v1148
      %v1272 = vadd.f32 %v1271, %v1152
      %v1273 = vadd.f32 %v1272, %v1156
      %v1274 = vadd.f32 %v1273, %v1160
      %v1275 = vadd.f32 %v1274, %v1164
      %v1276 = vadd.f32 %v1275, %v1168
      %v1277 = vadd.f32 %v1276, %v1172
      %v1278 = vadd.f32 %v1277, %v1176
      %v1279 = vadd.f32 %v1278, %v1180
      %v1280 = vadd.f32 %v1279, %v1184
      %v1281 = vadd.f32 %v1280, %v1188
      %v1282 = vadd.f32 %v1281, %v1192
      %v1283 = vadd.f32 %v1282, %v1196
      %v1284 = vadd.f32 %v1283, %v1200
      %v1285 = vadd.f32 %v1284, %v1204
      %v1286 = vadd.f32 %v1285, %v1208
      %v1287 = vadd.f32 %v1286, %v1212
      %v1288 = vadd.f32 %v1287, %v1216
      %v1289 = vadd.f32 %v1288, %v1220
      %v1290 = vadd.f32 %v1289, %v1224
      %v1291 = vadd.f32 %v1290, %v1228
      %v1292 = vadd.f32 %v1291, %v1232
      %v1293 = vadd.f32 %v1292, %v1236
      %v1294 = vadd.f32 %v1293, %v1240
      %v1295 = vadd.f32 %v1294, %v1244
      %v1296 = vadd.f32 %v1295, %v1248
      %v1297 = vadd.f32 %v1296, %v1252
      %v1298 = vadd.f32 %v1297, %v1256
      %v1299 = vadd.f32 %v1298, %v1260
      %v1300 = vadd.f32 %v1299, %v1264
      %v1301 = vadd.f32 %v1300, %v1268
      %v1302 = vrot.slane %v1301, 4
      %v1303 = vadd.f32 %v1301, %v1302
      %v1304 = vrot.slane %v1303, 2
      %v1305 = vadd.f32 %v1303, %v1304
      %v1306 = vrot.slane %v1305, 1
      %v1307 = vadd.f32 %v1305, %v1306
      %v1308 = vadd.f32 %v1146, %v1150
      %v1309 = vadd.f32 %v1308, %v1154
      %v1310 = vadd.f32 %v1309, %v1158
      %v1311 = vadd.f32 %v1310, %v1162
      %v1312 = vadd.f32 %v1311, %v1166
      %v1313 = vadd.f32 %v1312, %v1170
      %v1314 = vadd.f32 %v1313, %v1174
      %v1315 = vadd.f32 %v1314, %v1178
      %v1316 = vadd.f32 %v1315, %v1182
      %v1317 = vadd.f32 %v1316, %v1186
      %v1318 = vadd.f32 %v1317, %v1190
      %v1319 = vadd.f32 %v1318, %v1194
      %v1320 = vadd.f32 %v1319, %v1198
      %v1321 = vadd.f32 %v1320, %v1202
      %v1322 = vadd.f32 %v1321, %v1206
      %v1323 = vadd.f32 %v1322, %v1210
      %v1324 = vadd.f32 %v1323, %v1214
      %v1325 = vadd.f32 %v1324, %v1218
      %v1326 = vadd.f32 %v1325, %v1222
      %v1327 = vadd.f32 %v1326, %v1226
      %v1328 = vadd.f32 %v1327, %v1230
      %v1329 = vadd.f32 %v1328, %v1234
      %v1330 = vadd.f32 %v1329, %v1238
      %v1331 = vadd.f32 %v1330, %v1242
      %v1332 = vadd.f32 %v1331, %v1246
      %v1333 = vadd.f32 %v1332, %v1250
      %v1334 = vadd.f32 %v1333, %v1254
      %v1335 = vadd.f32 %v1334, %v1258
      %v1336 = vadd.f32 %v1335, %v1262
      %v1337 = vadd.f32 %v1336, %v1266
      %v1338 = vadd.f32 %v1337, %v1270
      %v1339 = vrot.slane %v1338, 4
      %v1340 = vadd.f32 %v1338, %v1339
      %v1341 = vrot.slane %v1340, 2
      %v1342 = vadd.f32 %v1340, %v1341
      %v1343 = vrot.slane %v1342, 1
      %v1344 = vadd.f32 %v1342, %v1343
      %1345 = vmatprep.subr.mxu0 %v1146
      %1346 = vmatpush1.msra.mxu0 %v1144
      %1347 = vmatprep.subr.mxu0 %v1150
      %1348 = vmatpush1.msra.mxu0 %v1148
      %1349 = vmatprep.subr.mxu0 %v1154
      %1350 = vmatpush1.msra.mxu0 %v1152
      %1351 = vmatprep.subr.mxu0 %v1158
      %1352 = vmatpush1.msra.mxu0 %v1156
      %1353 = vmatprep.subr.mxu0 %v1162
      %1354 = vmatpush1.msra.mxu0 %v1160
      %1355 = vmatprep.subr.mxu0 %v1166
      %1356 = vmatpush1.msra.mxu0 %v1164
      %1357 = vmatprep.subr.mxu0 %v1170
      %1358 = vmatpush1.msra.mxu0 %v1168
      %1359 = vmatprep.subr.mxu0 %v1174
      %1360 = vmatpush1.msra.mxu0 %v1172
      %1361 = vmatprep.subr.mxu0 %v1178
      %1362 = vmatpush1.msra.mxu0 %v1176
      %1363 = vmatprep.subr.mxu0 %v1182
      %1364 = vmatpush1.msra.mxu0 %v1180
      %1365 = vmatprep.subr.mxu0 %v1186
      %1366 = vmatpush1.msra.mxu0 %v1184
      %1367 = vmatprep.subr.mxu0 %v1190
      %1368 = vmatpush1.msra.mxu0 %v1188
      %1369 = vmatprep.subr.mxu0 %v1194
      %1370 = vmatpush1.msra.mxu0 %v1192
      %1371 = vmatprep.subr.mxu0 %v1198
      %1372 = vmatpush1.msra.mxu0 %v1196
      %1373 = vmatprep.subr.mxu0 %v1202
      %1374 = vmatpush1.msra.mxu0 %v1200
      %1375 = vmatprep.subr.mxu0 %v1206
      %1376 = vmatpush1.msra.mxu0 %v1204
      %1377 = vmatprep.subr.mxu0 %v1210
      %1378 = vmatpush1.msra.mxu0 %v1208
      %1379 = vmatprep.subr.mxu0 %v1214
      %1380 = vmatpush1.msra.mxu0 %v1212
      %1381 = vmatprep.subr.mxu0 %v1218
      %1382 = vmatpush1.msra.mxu0 %v1216
      %1383 = vmatprep.subr.mxu0 %v1222
      %1384 = vmatpush1.msra.mxu0 %v1220
      %1385 = vmatprep.subr.mxu0 %v1226
      %1386 = vmatpush1.msra.mxu0 %v1224
      %1387 = vmatprep.subr.mxu0 %v1230
      %1388 = vmatpush1.msra.mxu0 %v1228
      %1389 = vmatprep.subr.mxu0 %v1234
      %1390 = vmatpush1.msra.mxu0 %v1232
      %1391 = vmatprep.subr.mxu0 %v1238
      %1392 = vmatpush1.msra.mxu0 %v1236
      %1393 = vmatprep.subr.mxu0 %v1242
      %1394 = vmatpush1.msra.mxu0 %v1240
      %1395 = vmatprep.subr.mxu0 %v1246
      %1396 = vmatpush1.msra.mxu0 %v1244
      %1397 = vmatprep.subr.mxu0 %v1250
      %1398 = vmatpush1.msra.mxu0 %v1248
      %1399 = vmatprep.subr.mxu0 %v1254
      %1400 = vmatpush1.msra.mxu0 %v1252
      %1401 = vmatprep.subr.mxu0 %v1258
      %1402 = vmatpush1.msra.mxu0 %v1256
      %1403 = vmatprep.subr.mxu0 %v1262
      %1404 = vmatpush1.msra.mxu0 %v1260
      %1405 = vmatprep.subr.mxu0 %v1266
      %1406 = vmatpush1.msra.mxu0 %v1264
      %1407 = vmatprep.subr.mxu0 %v1270
      %1408 = vmatpush1.msra.mxu0 %v1268
      %1409 = vmatprep.mubr.f32.mxu0 %v536
      %1410 = vmatmul.mubr.f32.gmra.mrb[0].mxu0 %v534
      %v1411 = vpop.f32.mrb[0].mxu0
      %v1412 = vadd.f32 0.0, %v1411
      %v1413 = vpop.f32.mrb[0].mxu0
      %v1414 = vadd.f32 0.0, %v1413
      %1415 = vmatprep.mubr.f32.mxu0 %v542
      %1416 = vmatmul.mubr.f32.gmra.mrb[0].mxu0 %v540
      %v1417 = vpop.f32.mrb[0].mxu0
      %v1418 = vadd.f32 0.0, %v1417
      %v1419 = vpop.f32.mrb[0].mxu0
      %v1420 = vadd.f32 0.0, %v1419
      %1421 = vmatprep.mubr.f32.mxu0 %v548
      %1422 = vmatmul.mubr.f32.gmra.mrb[0].mxu0 %v546
      %v1423 = vpop.f32.mrb[0].mxu0
      %v1424 = vadd.f32 0.0, %v1423
      %v1425 = vpop.f32.mrb[0].mxu0
      %v1426 = vadd.f32 0.0, %v1425
      %1427 = vmatprep.mubr.f32.mxu0 %v554
      %1428 = vmatmul.mubr.f32.gmra.mrb[0].mxu0 %v552
      %v1429 = vpop.f32.mrb[0].mxu0
      %v1430 = vadd.f32 0.0, %v1429
      %v1431 = vpop.f32.mrb[0].mxu0
      %v1432 = vadd.f32 0.0, %v1431
      %1433 = vdwg.mxu0
      %v1434 = vrcp.pop %v1307
      %v1435 = vrcp.pop %v1344
      %v1436 = vmul.f32 %v1412, %v1434
      %v1437 = vmul.f32 %v1414, %v1435
      %v1438 = vmul.f32 %v1418, %v1434
      %v1439 = vmul.f32 %v1420, %v1435
      %v1440 = vmul.f32 %v1424, %v1434
      %v1441 = vmul.f32 %v1426, %v1435
      %v1442 = vmul.f32 %v1430, %v1434
      %v1443 = vmul.f32 %v1432, %v1435
      %v1444 = vld [vmem:[%s3] sm:$0xff]
      %v1445 = vld [vmem:[%s3 + $0x8] sm:$0xff]
      %v1446 = vld [vmem:[%s3 + $0x10] sm:$0xff]
      %v1447 = vld [vmem:[%s3 + $0x18] sm:$0xff]
      %v1449 = vsel %vm382, %v1444, 0
      %v1452 = vsel %vm382, %v1445, 0
      %v1455 = vsel %vm382, %v1446, 0
      %v1458 = vsel %vm382, %v1447, 0
      %1460 = vmatprep.subr.mxu0 %v1437
      %1461 = vmatpush1.msra.mxu0 %v1436
      %1462 = vmatprep.subr.mxu0 %v1439
      %1463 = vmatpush1.msra.mxu0 %v1438
      %1464 = vmatprep.subr.mxu0 %v1441
      %1465 = vmatpush1.msra.mxu0 %v1440
      %1466 = vmatprep.subr.mxu0 %v1443
      %1467 = vmatpush1.msra.mxu0 %v1442
      %1468 = vmatprep.subr.mxu0 0.0
      %1469 = vmatpush1.msra.mxu0 0.0
      %1470 = vmatprep.subr.mxu0 0.0
      %1471 = vmatpush1.msra.mxu0 0.0
      %1472 = vmatprep.subr.mxu0 0.0
      %1473 = vmatpush1.msra.mxu0 0.0
      %1474 = vmatprep.subr.mxu0 0.0
      %1475 = vmatpush1.msra.mxu0 0.0
      %1476 = vmatprep.subr.mxu0 0.0
      %1477 = vmatpush1.msra.mxu0 0.0
      %1478 = vmatprep.subr.mxu0 0.0
      %1479 = vmatpush1.msra.mxu0 0.0
      %1480 = vmatprep.subr.mxu0 0.0
      %1481 = vmatpush1.msra.mxu0 0.0
      %1482 = vmatprep.subr.mxu0 0.0
      %1483 = vmatpush1.msra.mxu0 0.0
      %1484 = vmatprep.subr.mxu0 0.0
      %1485 = vmatpush1.msra.mxu0 0.0
      %1486 = vmatprep.subr.mxu0 0.0
      %1487 = vmatpush1.msra.mxu0 0.0
      %1488 = vmatprep.subr.mxu0 0.0
      %1489 = vmatpush1.msra.mxu0 0.0
      %1490 = vmatprep.subr.mxu0 0.0
      %1491 = vmatpush1.msra.mxu0 0.0
      %1492 = vmatprep.subr.mxu0 0.0
      %1493 = vmatpush1.msra.mxu0 0.0
      %1494 = vmatprep.subr.mxu0 0.0
      %1495 = vmatpush1.msra.mxu0 0.0
      %1496 = vmatprep.subr.mxu0 0.0
      %1497 = vmatpush1.msra.mxu0 0.0
      %1498 = vmatprep.subr.mxu0 0.0
      %1499 = vmatpush1.msra.mxu0 0.0
      %1500 = vmatprep.subr.mxu0 0.0
      %1501 = vmatpush1.msra.mxu0 0.0
      %1502 = vmatprep.subr.mxu0 0.0
      %1503 = vmatpush1.msra.mxu0 0.0
      %1504 = vmatprep.subr.mxu0 0.0
      %1505 = vmatpush1.msra.mxu0 0.0
      %1506 = vmatprep.subr.mxu0 0.0
      %1507 = vmatpush1.msra.mxu0 0.0
      %1508 = vmatprep.subr.mxu0 0.0
      %1509 = vmatpush1.msra.mxu0 0.0
      %1510 = vmatprep.subr.mxu0 0.0
      %1511 = vmatpush1.msra.mxu0 0.0
      %1512 = vmatprep.subr.mxu0 0.0
      %1513 = vmatpush1.msra.mxu0 0.0
      %1514 = vmatprep.subr.mxu0 0.0
      %1515 = vmatpush1.msra.mxu0 0.0
      %1516 = vmatprep.subr.mxu0 0.0
      %1517 = vmatpush1.msra.mxu0 0.0
      %1518 = vmatprep.subr.mxu0 0.0
      %1519 = vmatpush1.msra.mxu0 0.0
      %1520 = vmatprep.subr.mxu0 0.0
      %1521 = vmatpush1.msra.mxu0 0.0
      %1522 = vmatprep.subr.mxu0 0.0
      %1523 = vmatpush1.msra.mxu0 0.0
      %1524 = vmatprep.mubr.f32.mxu0 0.0
      %1525 = vmatmul.mubr.f32.gmra.mrb[0].mxu0 %v1449
      %v1526 = vpop.f32.mrb[0].mxu0
      %v1527 = vadd.f32 0.0, %v1526
      %v1528 = vpop.f32.mrb[0].mxu0
      %v1529 = vadd.f32 0.0, %v1528
      %1530 = vmatprep.mubr.f32.mxu0 0.0
      %1531 = vmatmul.mubr.f32.gmra.mrb[0].mxu0 %v1452
      %v1532 = vpop.f32.mrb[0].mxu0
      %v1533 = vadd.f32 0.0, %v1532
      %v1534 = vpop.f32.mrb[0].mxu0
      %v1535 = vadd.f32 0.0, %v1534
      %1536 = vmatprep.mubr.f32.mxu0 0.0
      %1537 = vmatmul.mubr.f32.gmra.mrb[0].mxu0 %v1455
      %v1538 = vpop.f32.mrb[0].mxu0
      %v1539 = vadd.f32 0.0, %v1538
      %v1540 = vpop.f32.mrb[0].mxu0
      %v1541 = vadd.f32 0.0, %v1540
      %1542 = vmatprep.mubr.f32.mxu0 0.0
      %1543 = vmatmul.mubr.f32.gmra.mrb[0].mxu0 %v1458
      %v1544 = vpop.f32.mrb[0].mxu0
      %v1545 = vadd.f32 0.0, %v1544
      %v1546 = vpop.f32.mrb[0].mxu0
      %v1547 = vadd.f32 0.0, %v1546
      %1548 = vdwg.mxu0
      %v1549 = vadd.f32 %v580, %v1527
      %v1550 = vadd.f32 %v581, %v1529
      %v1551 = vadd.f32 %v582, %v1533
      %v1552 = vadd.f32 %v583, %v1535
      %v1553 = vadd.f32 %v584, %v1539
      %v1554 = vadd.f32 %v585, %v1541
      %v1555 = vadd.f32 %v586, %v1545
      %v1556 = vadd.f32 %v587, %v1547
      %1557 = vst [vmem:[%s224] sm:$0xff] %v1549
      %1558 = vst [vmem:[%s224 + $0x8] sm:$0xff] %v1550
      %1559 = vst [vmem:[%s224 + $0x10] sm:$0xff] %v1551
      %1560 = vst [vmem:[%s224 + $0x18] sm:$0xff] %v1552
      %1561 = vst [vmem:[%s224 + $0x20] sm:$0xff] %v1553
      %1562 = vst [vmem:[%s224 + $0x28] sm:$0xff] %v1554
      %1563 = vst [vmem:[%s224 + $0x30] sm:$0xff] %v1555
      %1564 = vst [vmem:[%s224 + $0x38] sm:$0xff] %v1556
      %p1565 = scmp.lt.s32.totalorder %s16, 1
      %s1566 = scalar_select %p1565, %s16, 1
      %s1567 = smul.addr %s1566, 8
      %s1568 = smul.addr %s1567, 8
      %s1569 = scalar_lea.vmem %s5, %s1568
      // Predicated region
      $region41: #{attention_block_pallas.1} parent=39 // pred_check
        %p1570 = pneg %p144
      $region42: #{attention_block_pallas.1} parent=39 // pred_check_branch
        %1572 = sbr.rel (%p1570) target = $region44
      $region43: #{attention_block_pallas.1} parent=39 // pred_region
        _
      $region44: #{attention_block_pallas.1} parent=39 // pred_fallthru
        _
    $region40: #{attention_block_pallas.1} parent=5 // pred_fallthru
      _
    %p1573 = scmp.le.s32.totalorder 2, %s11
    // Predicated region
    $region45: #{attention_block_pallas.1} parent=5 // pred_check
      %p1574 = pneg %p1573
    $region46: #{attention_block_pallas.1} parent=5 // pred_check_branch
      %1576 = sbr.rel (%p1574) target = $region48
    $region47: #{attention_block_pallas.1} parent=5 // pred_region
      %s1577 = ssub.s32 %s11, 2
      // Predicated region
      $region49: #{attention_block_pallas.1} parent=47 // pred_check
        %p1578 = pneg %p150
      $region50: #{attention_block_pallas.1} parent=47 // pred_check_branch
        %1580 = sbr.rel (%p1578) target = $region52
      $region51: #{attention_block_pallas.1} parent=47 // pred_region
        %p1581 = scmp.lt.s32.totalorder %s17, 1
        %s1582 = scalar_select %p1581, %s17, 1
        %s1583 = smul.addr %s1582, 8
        %s1584 = smul.addr %s1583, 8
        %s1585 = scalar_lea.vmem %s5, %s1584
      $region52: #{attention_block_pallas.1} parent=47 // pred_fallthru
        _
    $region48: #{attention_block_pallas.1} parent=5 // pred_fallthru
      _
  $region6: #{attention_block_pallas.1} parent=0 // loop_footer
    %s15 = sadd.s32 1, %s11
  $region7: #{attention_block_pallas.1} parent=0 // loop_footer_branch
    %10 = sbr.rel target = $region3
  $region8: #{attention_block_pallas.1} parent=0 // loop_exit
    _

</llo_original>
